<compile_context>
chip_gen: v5e
topology: v5e:2x2
jax: 0.10.0
libtpu: 0.0.40
codegen_flags: <defaults>
</compile_context>

<pallas_src>
import functools

import jax
import jax.numpy as jnp
from jax import lax
from jax.experimental import pallas as pl
from jax.experimental.pallas import tpu as pltpu


def _round_up(x, m):
    return (x + m - 1) // m * m


def _pick_tk(kp):
    # kp is a multiple of 128; pick the largest 128-multiple tile <= 512
    # that divides kp exactly (128 always works).
    for t in (512, 384, 256, 128):
        if kp % t == 0:
            return t
    return 128


# ----------------------------------------------------------------------------
# Kernel A: tiled matmul (conv-as-im2col), bf16 operands, f32 accumulation.
# Output block index is constant over the k axis, so it stays resident in
# VMEM and serves as the accumulator (no scratch needed).
# ----------------------------------------------------------------------------
def _matmul_kernel(p_ref, w_ref, o_ref):
    @pl.when(pl.program_id(1) == 0)
    def _init():
        o_ref[...] = jnp.zeros_like(o_ref)

    o_ref[...] += jnp.dot(p_ref[...], w_ref[...],
                          preferred_element_type=jnp.float32)


@functools.lru_cache(maxsize=None)
def _build_matmul(mp, tm, kp, tk, cout):
    return pl.pallas_call(
        _matmul_kernel,
        out_shape=jax.ShapeDtypeStruct((mp, cout), jnp.float32),
        grid_spec=pltpu.PrefetchScalarGridSpec(
            num_scalar_prefetch=0,
            grid=(mp // tm, kp // tk),
            in_specs=[
                pl.BlockSpec((tm, tk), lambda m, k: (m, k)),    # patches (bf16)
                pl.BlockSpec((tk, cout), lambda m, k: (k, 0)),  # weight  (bf16)
            ],
            out_specs=pl.BlockSpec((tm, cout), lambda m, k: (m, 0)),
        ),
        compiler_params=pltpu.CompilerParams(
            dimension_semantics=("parallel", "arbitrary"),
            vmem_limit_bytes=32 * 1024 * 1024),
    )


# ----------------------------------------------------------------------------
# Kernel B: fused BN-affine (precomputed scale/shift) + LeakyReLU(0.1)
#           + 1x1 conv (single-shot matmul) + bias. Lane-dense padded cout.
# ----------------------------------------------------------------------------
def _head_kernel(y_ref, sc_ref, sh_ref, w_ref, b_ref, o_ref):
    y = y_ref[...] * sc_ref[...] + sh_ref[...]          # BatchNorm as affine
    y = jnp.where(y > 0, y, 0.1 * y)                    # LeakyReLU(0.1)
    o_ref[...] = (jnp.dot(y.astype(jnp.bfloat16), w_ref[...],
                          preferred_element_type=jnp.float32)
                  + b_ref[...]).astype(o_ref.dtype)


@functools.lru_cache(maxsize=None)
def _build_head(mp, tm, c1, c2p):
    return pl.pallas_call(
        _head_kernel,
        out_shape=jax.ShapeDtypeStruct((mp, c2p), jnp.float32),
        grid_spec=pltpu.PrefetchScalarGridSpec(
            num_scalar_prefetch=0,
            grid=(mp // tm,),
            in_specs=[
                pl.BlockSpec((tm, c1), lambda m: (m, 0)),   # pre-BN conv1 out (f32)
                pl.BlockSpec((1, c1), lambda m: (0, 0)),    # BN scale
                pl.BlockSpec((1, c1), lambda m: (0, 0)),    # BN shift
                pl.BlockSpec((c1, c2p), lambda m: (0, 0)),  # 1x1 conv weight (bf16)
                pl.BlockSpec((1, c2p), lambda m: (0, 0)),   # 1x1 conv bias
            ],
            out_specs=pl.BlockSpec((tm, c2p), lambda m: (m, 0)),
        ),
        compiler_params=pltpu.CompilerParams(
            dimension_semantics=("parallel",),
            vmem_limit_bytes=32 * 1024 * 1024),
    )


# ----------------------------------------------------------------------------
# Glue
# ----------------------------------------------------------------------------
def _im2col_3x3(x_nhwc):
    # TODO(synk): move im2col into the matmul kernel ((kh,kw) as extra
    # reduction grid axes over the padded NHWC input) to avoid the 9x patch
    # expansion through HBM on large spatial sizes.
    n, h, w, c = x_nhwc.shape
    xp = jnp.pad(x_nhwc, ((0, 0), (1, 1), (1, 1), (0, 0)))
    cols = [xp[:, i:i + h, j:j + w, :] for i in range(3) for j in range(3)]
    return jnp.concatenate(cols, axis=-1).reshape(n * h * w, 9 * c)


def scale_prediction_forward(params, x_nchw, num_classes):
    x = jnp.transpose(x_nchw, (0, 2, 3, 1)).astype(jnp.float32)  # NCHW -> NHWC
    n, h, w, cin = x.shape
    c1 = 2 * cin
    c2 = (num_classes + 5) * 3

    # ---- conv1: 3x3, pad 1 (im2col matmul, bf16 MXU operands / f32 acc) ----
    patches = _im2col_3x3(x)
    m, k = patches.shape
    tm = min(256, _round_up(m, 8))
    mp = _round_up(m, tm)
    kp = _round_up(k, 128)
    tk = _pick_tk(kp)
    patches = jnp.pad(patches, ((0, mp - m), (0, kp - k))).astype(jnp.bfloat16)
    w1 = jnp.pad(params['w1'].reshape(k, c1),
                 ((0, kp - k), (0, 0))).astype(jnp.bfloat16)
    # conv1 bias is dropped: training-mode BatchNorm mean subtraction cancels
    # it exactly, so the forward result is unchanged.
    y1 = _build_matmul(mp, tm, kp, tk, c1)(patches, w1)   # (mp, c1) f32, pre-BN

    # ---- BatchNorm2d, training-mode batch statistics (global over N*H*W) ----
    yv = y1[:m]
    mean = jnp.mean(yv, axis=0)
    var = jnp.mean(jnp.square(yv - mean), axis=0)         # biased, as PyTorch uses
    scale = params['g1'] * lax.rsqrt(var + 1e-5)
    shift = params['bt1'] - mean * scale

    # ---- fused BN + LeakyReLU + 1x1 conv (+bias); cout padded to 128 ----
    c2p = _round_up(c2, 128)
    w2 = jnp.pad(params['w2'].reshape(c1, c2),
                 ((0, 0), (0, c2p - c2))).astype(jnp.bfloat16)
    b2 = jnp.pad(params['b2'], (0, c2p - c2)).reshape(1, c2p)
    out = _build_head(mp, tm, c1, c2p)(
        y1, scale.reshape(1, c1), shift.reshape(1, c1), w2, b2)

    # slice off M/cout padding, then mirror .view(N,3,nc+5,H,W).permute(0,1,3,4,2)
    out = out[:m, :c2].reshape(n, h, w, 3, num_classes + 5)
    return jnp.transpose(out, (0, 3, 1, 2, 4))            # (N, 3, H, W, nc+5)


def init_params(key, in_channels, num_classes):
    c1 = 2 * in_channels
    c2 = (num_classes + 5) * 3
    k1, k2, k3 = jax.random.split(key, 3)
    w1 = jax.random.normal(k1, (3, 3, in_channels, c1), jnp.float32) \
        * (9 * in_channels) ** -0.5
    w2 = jax.random.normal(k2, (1, 1, c1, c2), jnp.float32) * c1 ** -0.5
    b2 = jax.random.normal(k3, (c2,), jnp.float32) * 0.01
    return {
        'w1': w1,
        'g1': jnp.ones((c1,), jnp.float32),    # BN gamma (PyTorch default)
        'bt1': jnp.zeros((c1,), jnp.float32),  # BN beta  (PyTorch default)
        'w2': w2,
        'b2': b2,
    }


if __name__ == "__main__":
    N, CIN, H, W = 2, 128, 16, 16
    NUM_CLASSES = 20

    key = jax.random.PRNGKey(0)
    kx, kp = jax.random.split(key)
    x = jax.random.normal(kx, (N, CIN, H, W), jnp.float32)
    params = init_params(kp, CIN, NUM_CLASSES)

    fwd = jax.jit(functools.partial(scale_prediction_forward,
                                    num_classes=NUM_CLASSES))
    out = fwd(params, x)
    out = jax.block_until_ready(out)

    assert tuple(out.shape) == (N, 3, H, W, NUM_CLASSES + 5), out.shape
    assert bool(jnp.all(jnp.isfinite(out)))
    print("KERNEL_OK")
</pallas_src>

<mosaic_0001>
module attributes {stable_mosaic.version = 11 : i64} {
  func.func @_matmul_kernel(%arg0: i32, %arg1: i32, %arg2: memref<256x384xbf16, #tpu.memory_space<vmem>>, %arg3: memref<384x256xbf16, #tpu.memory_space<vmem>>, %arg4: memref<256x256xf32, #tpu.memory_space<vmem>>) attributes {dimension_semantics = [#tpu.dimension_semantics<parallel>, #tpu.dimension_semantics<arbitrary>], iteration_bounds = array<i64: 2, 3>, scalar_prefetch = 0 : i64, scratch_operands = 0 : i64, tpu.core_type = #tpu.core_type<tc>, window_params = [{transform_indices = @transform_0, window_bounds = array<i64: 256, 384>}, {transform_indices = @transform_1, window_bounds = array<i64: 384, 256>}, {transform_indices = @transform_2, window_bounds = array<i64: 256, 256>}]} {
    %c0_i32 = arith.constant 0 : i32
    %0 = arith.cmpi eq, %arg1, %c0_i32 : i32
    %1 = arith.extui %0 : i1 to i32
    %c0_i32_0 = arith.constant 0 : i32
    %2 = arith.cmpi ne, %1, %c0_i32_0 : i32
    scf.if %2 {
      %cst_8 = arith.constant 0.000000e+00 : f32
      %9 = vector.broadcast %cst_8 : f32 to vector<256x256xf32>
      %c0_9 = arith.constant 0 : index
      %c0_10 = arith.constant 0 : index
      %10 = vector.load %arg4[%c0_9, %c0_10] : memref<256x256xf32, #tpu.memory_space<vmem>>, vector<256x256xf32>
      tpu.vector_store %arg4[%c0_9, %c0_10], %9 {strides = array<i32>} : memref<256x256xf32, #tpu.memory_space<vmem>>, vector<256x256xf32>,
    } else {
    }
    %c0 = arith.constant 0 : index
    %c0_1 = arith.constant 0 : index
    %3 = vector.load %arg4[%c0, %c0_1] : memref<256x256xf32, #tpu.memory_space<vmem>>, vector<256x256xf32>
    %c0_2 = arith.constant 0 : index
    %c0_3 = arith.constant 0 : index
    %4 = vector.load %arg2[%c0_2, %c0_3] : memref<256x384xbf16, #tpu.memory_space<vmem>>, vector<256x384xbf16>
    %c0_4 = arith.constant 0 : index
    %c0_5 = arith.constant 0 : index
    %5 = vector.load %arg3[%c0_4, %c0_5] : memref<384x256xbf16, #tpu.memory_space<vmem>>, vector<384x256xbf16>
    %cst = arith.constant dense<0.000000e+00> : vector<256x256xf32>
    %6 = tpu.matmul %4, %5, %cst {dimension_numbers = #tpu.dot_dimension_numbers<[1], [0], [0], [1], [0, 0, 1, 1], [], []>} : vector<256x384xbf16>, vector<384x256xbf16>, vector<256x256xf32> -> vector<256x256xf32>
    %7 = arith.addf %3, %6 : vector<256x256xf32>
    %c0_6 = arith.constant 0 : index
    %c0_7 = arith.constant 0 : index
    %8 = vector.load %arg4[%c0_6, %c0_7] : memref<256x256xf32, #tpu.memory_space<vmem>>, vector<256x256xf32>
    tpu.vector_store %arg4[%c0_6, %c0_7], %7 {strides = array<i32>} : memref<256x256xf32, #tpu.memory_space<vmem>>, vector<256x256xf32>,
    return
  }
  func.func @transform_0(%arg0: i32, %arg1: i32) -> (i32, i32) {
    %c0_i32 = arith.constant 0 : i32
    return %arg0, %arg1 : i32, i32
  }
  func.func @transform_1(%arg0: i32, %arg1: i32) -> (i32, i32) {
    %c0_i32 = arith.constant 0 : i32
    %c0_i32_0 = arith.constant 0 : i32
    return %arg1, %c0_i32 : i32, i32
  }
  func.func @transform_2(%arg0: i32, %arg1: i32) -> (i32, i32) {
    %c0_i32 = arith.constant 0 : i32
    %c0_i32_0 = arith.constant 0 : i32
    return %arg0, %c0_i32 : i32, i32
  }
}

module attributes {stable_mosaic.version = 11 : i64} {
  func.func @_head_kernel(%arg0: i32, %arg1: memref<256x256xf32, #tpu.memory_space<vmem>>, %arg2: memref<1x256xf32, #tpu.memory_space<vmem>>, %arg3: memref<1x256xf32, #tpu.memory_space<vmem>>, %arg4: memref<256x128xbf16, #tpu.memory_space<vmem>>, %arg5: memref<1x128xf32, #tpu.memory_space<vmem>>, %arg6: memref<256x128xf32, #tpu.memory_space<vmem>>) attributes {dimension_semantics = [#tpu.dimension_semantics<parallel>], iteration_bounds = array<i64: 2>, scalar_prefetch = 0 : i64, scratch_operands = 0 : i64, tpu.core_type = #tpu.core_type<tc>, window_params = [{transform_indices = @transform_0, window_bounds = array<i64: 256, 256>}, {pipeline_mode = #tpu.pipeline_mode<synchronous>, transform_indices = @transform_1, window_bounds = array<i64: 1, 256>}, {pipeline_mode = #tpu.pipeline_mode<synchronous>, transform_indices = @transform_2, window_bounds = array<i64: 1, 256>}, {pipeline_mode = #tpu.pipeline_mode<synchronous>, transform_indices = @transform_3, window_bounds = array<i64: 256, 128>}, {pipeline_mode = #tpu.pipeline_mode<synchronous>, transform_indices = @transform_4, window_bounds = array<i64: 1, 128>}, {transform_indices = @transform_5, window_bounds = array<i64: 256, 128>}]} {
    %c0 = arith.constant 0 : index
    %c0_0 = arith.constant 0 : index
    %0 = vector.load %arg1[%c0, %c0_0] : memref<256x256xf32, #tpu.memory_space<vmem>>, vector<256x256xf32>
    %c0_1 = arith.constant 0 : index
    %c0_2 = arith.constant 0 : index
    %1 = vector.load %arg2[%c0_1, %c0_2] : memref<1x256xf32, #tpu.memory_space<vmem>>, vector<1x256xf32>
    %2 = vector.broadcast %1 : vector<1x256xf32> to vector<256x256xf32>
    %3 = arith.mulf %0, %2 : vector<256x256xf32>
    %c0_3 = arith.constant 0 : index
    %c0_4 = arith.constant 0 : index
    %4 = vector.load %arg3[%c0_3, %c0_4] : memref<1x256xf32, #tpu.memory_space<vmem>>, vector<1x256xf32>
    %5 = vector.broadcast %4 : vector<1x256xf32> to vector<256x256xf32>
    %6 = arith.addf %3, %5 : vector<256x256xf32>
    %cst = arith.constant 0.000000e+00 : f32
    %7 = vector.broadcast %cst : f32 to vector<256x256xf32>
    %8 = arith.cmpf ogt, %6, %7 : vector<256x256xf32>
    %cst_5 = arith.constant 1.000000e-01 : f32
    %9 = vector.broadcast %cst_5 : f32 to vector<256x256xf32>
    %10 = arith.mulf %9, %6 : vector<256x256xf32>
    %11 = arith.select %8, %6, %10 : vector<256x256xi1>, vector<256x256xf32>
    %12 = arith.truncf %11 : vector<256x256xf32> to vector<256x256xbf16>
    %c0_6 = arith.constant 0 : index
    %c0_7 = arith.constant 0 : index
    %13 = vector.load %arg4[%c0_6, %c0_7] : memref<256x128xbf16, #tpu.memory_space<vmem>>, vector<256x128xbf16>
    %cst_8 = arith.constant dense<0.000000e+00> : vector<256x128xf32>
    %14 = tpu.matmul %12, %13, %cst_8 {dimension_numbers = #tpu.dot_dimension_numbers<[1], [0], [0], [1], [0, 0, 1, 1], [], []>} : vector<256x256xbf16>, vector<256x128xbf16>, vector<256x128xf32> -> vector<256x128xf32>
    %c0_9 = arith.constant 0 : index
    %c0_10 = arith.constant 0 : index
    %15 = vector.load %arg5[%c0_9, %c0_10] : memref<1x128xf32, #tpu.memory_space<vmem>>, vector<1x128xf32>
    %16 = vector.broadcast %15 : vector<1x128xf32> to vector<256x128xf32>
    %17 = arith.addf %14, %16 : vector<256x128xf32>
    %c0_11 = arith.constant 0 : index
    %c0_12 = arith.constant 0 : index
    %18 = vector.load %arg6[%c0_11, %c0_12] : memref<256x128xf32, #tpu.memory_space<vmem>>, vector<256x128xf32>
    tpu.vector_store %arg6[%c0_11, %c0_12], %17 {strides = array<i32>} : memref<256x128xf32, #tpu.memory_space<vmem>>, vector<256x128xf32>,
    return
  }
  func.func @transform_0(%arg0: i32) -> (i32, i32) {
    %c0_i32 = arith.constant 0 : i32
    %c0_i32_0 = arith.constant 0 : i32
    return %arg0, %c0_i32 : i32, i32
  }
  func.func @transform_1(%arg0: i32) -> (i32, i32) {
    %c0_i32 = arith.constant 0 : i32
    %c0_i32_0 = arith.constant 0 : i32
    %c0_i32_1 = arith.constant 0 : i32
    return %c0_i32, %c0_i32_0 : i32, i32
  }
  func.func @transform_2(%arg0: i32) -> (i32, i32) {
    %c0_i32 = arith.constant 0 : i32
    %c0_i32_0 = arith.constant 0 : i32
    %c0_i32_1 = arith.constant 0 : i32
    return %c0_i32, %c0_i32_0 : i32, i32
  }
  func.func @transform_3(%arg0: i32) -> (i32, i32) {
    %c0_i32 = arith.constant 0 : i32
    %c0_i32_0 = arith.constant 0 : i32
    %c0_i32_1 = arith.constant 0 : i32
    return %c0_i32, %c0_i32_0 : i32, i32
  }
  func.func @transform_4(%arg0: i32) -> (i32, i32) {
    %c0_i32 = arith.constant 0 : i32
    %c0_i32_0 = arith.constant 0 : i32
    %c0_i32_1 = arith.constant 0 : i32
    return %c0_i32, %c0_i32_0 : i32, i32
  }
  func.func @transform_5(%arg0: i32) -> (i32, i32) {
    %c0_i32 = arith.constant 0 : i32
    %c0_i32_0 = arith.constant 0 : i32
    return %arg0, %c0_i32 : i32, i32
  }
}

</mosaic_0001>

<llo_original>
// kernel: scale_prediction_forward.2
$region0: #{scale_prediction_forward.2}
  #allocation0 [shape = 'u32[]', space=smem, size = 0x4, offset = 0x4, fixed_abs, tag = 'smem constant byte address 0x4 - core index']
  #allocation1 [shape = 'u32[72,128]{1,0:T(1,128)}', space=vmem, size = 0x9000, scoped, tag = 'internal scratch']
  %s0 = inlined_call_operand.vmem [shape: bf16[512,1152], index: 0, kind: input, shape index: {}]
  %s1 = inlined_call_operand.vmem [shape: bf16[1152,256], index: 1, kind: input, shape index: {}]
  %s2 = inlined_call_operand.vmem [shape: f32[512,256], index: 2, kind: output, shape index: {}]
  %s3 = sld [smem:[#allocation0]]
  $region71: #{scale_prediction_forward.2} parent=0
    _
  %s5 = ssub.s32 1, %s3
  %s6 = scalar_select 0, %s5, %s3
  $region1: #{scale_prediction_forward.2} parent=0
    #allocation2 [shape = 'u8[393216]{0}', space=vmem, size = 0x60000, scoped, tag = 'input window, operand 0']
    loop: start=0, step=1, limit=8
    $region2: #{scale_prediction_forward.2} parent=1 // loop_pre_header
      _
    $region3: #{scale_prediction_forward.2} parent=1 // loop_header
      %s8 = sphi 0, %s12
      %p9 = scmp.ge.s32.totalorder %s8, 8
      %s15 = sphi 0, %s27
      %s16 = sphi 0, %s23
      %s17 = sphi 0, %s15
      %s18 = sphi 0, %s16
      %s19 = sphi 0, %s17
      %s20 = sphi 0, %s18
      %s32 = sphi 0, %s34
      %s35 = sphi 0, %s32
      %s36 = sphi 0, %s35
      %s52 = sphi 0, %s36
      %s58 = sphi 0, %s60
      %s61 = sphi 0, %s58
      %s62 = sphi 0, %s61
      %s78 = sphi 0, %s62
      %s84 = sphi 0, %s86
      %s87 = sphi 0, %s84
      %s88 = sphi 0, %s87
      %s104 = sphi 0, %s88
    $region4: #{scale_prediction_forward.2} parent=1 // loop_header_branch
      %11 = sbr.rel (%p9) target = $region8
    $region5: #{scale_prediction_forward.2} parent=1 // loop_body
      %s13 = ssub.s32 %s8, 1
      %s14 = ssub.s32 %s8, 2
      %s21 = sadd.s32 1, %s16
      %p22 = scmp.ge.s32.totalorder %s21, 3
      %s23 = scalar_select %p22, 0, %s21
      %s24 = sadd.s32 1, %s15
      %s25 = scalar_select %p22, %s24, %s15
      %p26 = scmp.ge.s32.totalorder %s25, 2
      %s27 = scalar_select %p26, 0, %s25
      %s28 = ssub.s32 %s15, %s27
      %s29 = ssub.s32 %s16, %s23
      %s30 = sor.u32 %s28, %s29
      %p31 = scmp.eq.s32.totalorder %s30, 0
      %s33 = sadd.s32 %s32, 1
      %s34 = scalar_select %p31, %s32, %s33
      %p37 = pneg %p31
      %p38 = scmp.eq.s32.totalorder %s8, 5
      %p39 = por %p37, %p38
      %p40 = scmp.ne.s32.totalorder %s32, %s35
      %p41 = scmp.eq.s32.totalorder %s8, 0
      %p42 = por %p40, %p41
      %p43 = scmp.ne.s32.totalorder %s32, %s35
      %p44 = scmp.eq.s32.totalorder %s13, 5
      %p45 = por %p43, %p44
      %p46 = scmp.ne.s32.totalorder %s35, %s36
      %p47 = scmp.eq.s32.totalorder %s13, 0
      %p48 = por %p46, %p47
      %p49 = scmp.ne.s32.totalorder %s35, %s36
      %p50 = scmp.eq.s32.totalorder %s14, 5
      %p51 = por %p49, %p50
      %p53 = scmp.ne.s32.totalorder %s36, %s52
      %p54 = scmp.eq.s32.totalorder %s14, 0
      %p55 = por %p53, %p54
      %s56 = ssub.s32 %s16, %s23
      %p57 = scmp.eq.s32.totalorder %s56, 0
      %s59 = sadd.s32 %s58, 1
      %s60 = scalar_select %p57, %s58, %s59
      %p63 = pneg %p57
      %p64 = scmp.eq.s32.totalorder %s8, 5
      %p65 = por %p63, %p64
      %p66 = scmp.ne.s32.totalorder %s58, %s61
      %p67 = scmp.eq.s32.totalorder %s8, 0
      %p68 = por %p66, %p67
      %p69 = scmp.ne.s32.totalorder %s58, %s61
      %p70 = scmp.eq.s32.totalorder %s13, 5
      %p71 = por %p69, %p70
      %p72 = scmp.ne.s32.totalorder %s61, %s62
      %p73 = scmp.eq.s32.totalorder %s13, 0
      %p74 = por %p72, %p73
      %p75 = scmp.ne.s32.totalorder %s61, %s62
      %p76 = scmp.eq.s32.totalorder %s14, 5
      %p77 = por %p75, %p76
      %p79 = scmp.ne.s32.totalorder %s62, %s78
      %p80 = scmp.eq.s32.totalorder %s14, 0
      %p81 = por %p79, %p80
      %s82 = ssub.s32 %s15, %s27
      %p83 = scmp.eq.s32.totalorder %s82, 0
      %s85 = sadd.s32 %s84, 1
      %s86 = scalar_select %p83, %s84, %s85
      %p89 = pneg %p83
      %p90 = scmp.eq.s32.totalorder %s8, 5
      %p91 = por %p89, %p90
      %p92 = scmp.ne.s32.totalorder %s84, %s87
      %p93 = scmp.eq.s32.totalorder %s8, 0
      %p94 = por %p92, %p93
      %p95 = scmp.ne.s32.totalorder %s84, %s87
      %p96 = scmp.eq.s32.totalorder %s13, 5
      %p97 = por %p95, %p96
      %p98 = scmp.ne.s32.totalorder %s87, %s88
      %p99 = scmp.eq.s32.totalorder %s13, 0
      %p100 = por %p98, %p99
      %p101 = scmp.ne.s32.totalorder %s87, %s88
      %p102 = scmp.eq.s32.totalorder %s14, 5
      %p103 = por %p101, %p102
      %p105 = scmp.ne.s32.totalorder %s88, %s104
      %p106 = scmp.eq.s32.totalorder %s14, 0
      %p107 = por %p105, %p106
      %p108 = scmp.le.s32.totalorder 1, %s8
      %p109 = scmp.lt.s32.totalorder %s8, 7
      %p110 = pnand %p108, %p109
      %p111 = pneg %p110
      // Predicated region
      $region9: #{scale_prediction_forward.2} parent=5 // pred_check
        _
      $region10: #{scale_prediction_forward.2} parent=5 // pred_check_branch
        %113 = sbr.rel (%p110) target = $region12
      $region11: #{scale_prediction_forward.2} parent=5 // pred_region
        %s114 = ssub.s32 %s8, 1
      $region12: #{scale_prediction_forward.2} parent=5 // pred_fallthru
        _
      %p115 = scmp.lt.s32.totalorder %s8, 6
      // Predicated region
      $region13: #{scale_prediction_forward.2} parent=5 // pred_check
        %p116 = pneg %p115
      $region14: #{scale_prediction_forward.2} parent=5 // pred_check_branch
        %118 = sbr.rel (%p116) target = $region16
      $region15: #{scale_prediction_forward.2} parent=5 // pred_region
        // Predicated region
        $region17: #{scale_prediction_forward.2} parent=15 // pred_check
          %p119 = pneg %p42
        $region18: #{scale_prediction_forward.2} parent=15 // pred_check_branch
          %121 = sbr.rel (%p119) target = $region20
        $region19: #{scale_prediction_forward.2} parent=15 // pred_region
          %s122 = sand.u32 %s32, 1
          %s123 = sand.u32 %s32, 1
          %s124 = smul.addr %s123, 384
          %s125 = scalar_lea.vmem [#allocation2], %s124
          %s126 = smul.u32 32, %s15
          %s127 = smul.u32 3, %s16
          %s128 = smul.addr %s126, 9
          %s129 = sadd.s32 %s127, %s128
          %s130 = smul.addr %s129, 4
          %s131 = scalar_lea.vmem %s0, %s130
          // Predicated region
          $region21: #{scale_prediction_forward.2} parent=19 // pred_check
            _
          $region22: #{scale_prediction_forward.2} parent=19 // pred_check_branch
            %133 = sbr.rel (0) target = $region24
          $region23: #{scale_prediction_forward.2} parent=19 // pred_region
            // Predicated region
            $region25: #{scale_prediction_forward.2} parent=23 // pred_check
              _
            $region26: #{scale_prediction_forward.2} parent=23 // pred_check_branch
              %135 = sbr.rel (0) target = $region28
            $region27: #{scale_prediction_forward.2} parent=23 // pred_region
              %s136 = scalar_lea.vmem %s131, 8
              %s137 = scalar_lea.vmem %s125, 8 [#allocation2]
              loop: start=0, step=1, limit=1
              $region29: #{scale_prediction_forward.2} parent=27 // loop_pre_header
                _
              $region30: #{scale_prediction_forward.2} parent=27 // loop_header
                %s139 = sphi 0, %s143
                %p140 = scmp.ge.s32.totalorder %s139, 1
                %s144 = sphi %s131, %s131
                %s145 = sphi %s125, %s125
              $region31: #{scale_prediction_forward.2} parent=27 // loop_header_branch
                %142 = sbr.rel (%p140) target = $region35
              $region32: #{scale_prediction_forward.2} parent=27 // loop_body
                %v146 = vld [vmem:[%s144] sm:$0xff]
                %147 = vst [vmem:[%s145] sm:$0xff] %v146
                %v148 = vld [vmem:[%s144 + $0x24] sm:$0xff]
                %149 = vst [vmem:[%s145 + $0xc] sm:$0xff] %v148
                %v150 = vld [vmem:[%s144 + $0x48] sm:$0xff]
                %151 = vst [vmem:[%s145 + $0x18] sm:$0xff] %v150
                %v152 = vld [vmem:[%s144 + $0x6c] sm:$0xff]
                %153 = vst [vmem:[%s145 + $0x24] sm:$0xff] %v152
                %v154 = vld [vmem:[%s144 + $0x90] sm:$0xff]
                %155 = vst [vmem:[%s145 + $0x30] sm:$0xff] %v154
                %v156 = vld [vmem:[%s144 + $0xb4] sm:$0xff]
                %157 = vst [vmem:[%s145 + $0x3c] sm:$0xff] %v156
                %v158 = vld [vmem:[%s144 + $0xd8] sm:$0xff]
                %159 = vst [vmem:[%s145 + $0x48] sm:$0xff] %v158
                %v160 = vld [vmem:[%s144 + $0xfc] sm:$0xff]
                %161 = vst [vmem:[%s145 + $0x54] sm:$0xff] %v160
                %v162 = vld [vmem:[%s144 + $0x120] sm:$0xff]
                %163 = vst [vmem:[%s145 + $0x60] sm:$0xff] %v162
                %v164 = vld [vmem:[%s144 + $0x144] sm:$0xff]
                %165 = vst [vmem:[%s145 + $0x6c] sm:$0xff] %v164
                %v166 = vld [vmem:[%s144 + $0x168] sm:$0xff]
                %167 = vst [vmem:[%s145 + $0x78] sm:$0xff] %v166
                %v168 = vld [vmem:[%s144 + $0x18c] sm:$0xff]
                %169 = vst [vmem:[%s145 + $0x84] sm:$0xff] %v168
                %v170 = vld [vmem:[%s144 + $0x1b0] sm:$0xff]
                %171 = vst [vmem:[%s145 + $0x90] sm:$0xff] %v170
                %v172 = vld [vmem:[%s144 + $0x1d4] sm:$0xff]
                %173 = vst [vmem:[%s145 + $0x9c] sm:$0xff] %v172
                %v174 = vld [vmem:[%s144 + $0x1f8] sm:$0xff]
                %175 = vst [vmem:[%s145 + $0xa8] sm:$0xff] %v174
                %v176 = vld [vmem:[%s144 + $0x21c] sm:$0xff]
                %177 = vst [vmem:[%s145 + $0xb4] sm:$0xff] %v176
                %v178 = vld [vmem:[%s144 + $0x240] sm:$0xff]
                %179 = vst [vmem:[%s145 + $0xc0] sm:$0xff] %v178
                %v180 = vld [vmem:[%s144 + $0x264] sm:$0xff]
                %181 = vst [vmem:[%s145 + $0xcc] sm:$0xff] %v180
                %v182 = vld [vmem:[%s144 + $0x288] sm:$0xff]
                %183 = vst [vmem:[%s145 + $0xd8] sm:$0xff] %v182
                %v184 = vld [vmem:[%s144 + $0x2ac] sm:$0xff]
                %185 = vst [vmem:[%s145 + $0xe4] sm:$0xff] %v184
                %v186 = vld [vmem:[%s144 + $0x2d0] sm:$0xff]
                %187 = vst [vmem:[%s145 + $0xf0] sm:$0xff] %v186
                %v188 = vld [vmem:[%s144 + $0x2f4] sm:$0xff]
                %189 = vst [vmem:[%s145 + $0xfc] sm:$0xff] %v188
                %v190 = vld [vmem:[%s144 + $0x318] sm:$0xff]
                %191 = vst [vmem:[%s145 + $0x108] sm:$0xff] %v190
                %v192 = vld [vmem:[%s144 + $0x33c] sm:$0xff]
                %193 = vst [vmem:[%s145 + $0x114] sm:$0xff] %v192
                %v194 = vld [vmem:[%s144 + $0x360] sm:$0xff]
                %195 = vst [vmem:[%s145 + $0x120] sm:$0xff] %v194
                %v196 = vld [vmem:[%s144 + $0x384] sm:$0xff]
                %197 = vst [vmem:[%s145 + $0x12c] sm:$0xff] %v196
                %v198 = vld [vmem:[%s144 + $0x3a8] sm:$0xff]
                %199 = vst [vmem:[%s145 + $0x138] sm:$0xff] %v198
                %v200 = vld [vmem:[%s144 + $0x3cc] sm:$0xff]
                %201 = vst [vmem:[%s145 + $0x144] sm:$0xff] %v200
                %v202 = vld [vmem:[%s144 + $0x3f0] sm:$0xff]
                %203 = vst [vmem:[%s145 + $0x150] sm:$0xff] %v202
                %v204 = vld [vmem:[%s144 + $0x414] sm:$0xff]
                %205 = vst [vmem:[%s145 + $0x15c] sm:$0xff] %v204
                %v206 = vld [vmem:[%s144 + $0x438] sm:$0xff]
                %207 = vst [vmem:[%s145 + $0x168] sm:$0xff] %v206
                %v208 = vld [vmem:[%s144 + $0x45c] sm:$0xff]
                %209 = vst [vmem:[%s145 + $0x174] sm:$0xff] %v208
              $region33: #{scale_prediction_forward.2} parent=27 // loop_footer
                %s143 = sadd.s32 1, %s139
              $region34: #{scale_prediction_forward.2} parent=27 // loop_footer_branch
                %138 = sbr.rel target = $region30
              $region35: #{scale_prediction_forward.2} parent=27 // loop_exit
                _
              %s211 = ssub.s32 16, 1
              loop: start=0, step=1, limit=1
              $region36: #{scale_prediction_forward.2} parent=27 // loop_pre_header
                _
              $region37: #{scale_prediction_forward.2} parent=27 // loop_header
                %s213 = sphi 0, %s217
                %p214 = scmp.ge.s32.totalorder %s213, 1
                %s218 = sphi %s136, %s136
                %s219 = sphi %s137, %s137
              $region38: #{scale_prediction_forward.2} parent=27 // loop_header_branch
                %216 = sbr.rel (%p214) target = $region42
              $region39: #{scale_prediction_forward.2} parent=27 // loop_body
                %v220 = vld [vmem:[%s218] sm:%s211]
                %221 = vst [vmem:[%s219] sm:%s211] %v220
                %v222 = vld [vmem:[%s218 + $0x24] sm:%s211]
                %223 = vst [vmem:[%s219 + $0xc] sm:%s211] %v222
                %v224 = vld [vmem:[%s218 + $0x48] sm:%s211]
                %225 = vst [vmem:[%s219 + $0x18] sm:%s211] %v224
                %v226 = vld [vmem:[%s218 + $0x6c] sm:%s211]
                %227 = vst [vmem:[%s219 + $0x24] sm:%s211] %v226
                %v228 = vld [vmem:[%s218 + $0x90] sm:%s211]
                %229 = vst [vmem:[%s219 + $0x30] sm:%s211] %v228
                %v230 = vld [vmem:[%s218 + $0xb4] sm:%s211]
                %231 = vst [vmem:[%s219 + $0x3c] sm:%s211] %v230
                %v232 = vld [vmem:[%s218 + $0xd8] sm:%s211]
                %233 = vst [vmem:[%s219 + $0x48] sm:%s211] %v232
                %v234 = vld [vmem:[%s218 + $0xfc] sm:%s211]
                %235 = vst [vmem:[%s219 + $0x54] sm:%s211] %v234
                %v236 = vld [vmem:[%s218 + $0x120] sm:%s211]
                %237 = vst [vmem:[%s219 + $0x60] sm:%s211] %v236
                %v238 = vld [vmem:[%s218 + $0x144] sm:%s211]
                %239 = vst [vmem:[%s219 + $0x6c] sm:%s211] %v238
                %v240 = vld [vmem:[%s218 + $0x168] sm:%s211]
                %241 = vst [vmem:[%s219 + $0x78] sm:%s211] %v240
                %v242 = vld [vmem:[%s218 + $0x18c] sm:%s211]
                %243 = vst [vmem:[%s219 + $0x84] sm:%s211] %v242
                %v244 = vld [vmem:[%s218 + $0x1b0] sm:%s211]
                %245 = vst [vmem:[%s219 + $0x90] sm:%s211] %v244
                %v246 = vld [vmem:[%s218 + $0x1d4] sm:%s211]
                %247 = vst [vmem:[%s219 + $0x9c] sm:%s211] %v246
                %v248 = vld [vmem:[%s218 + $0x1f8] sm:%s211]
                %249 = vst [vmem:[%s219 + $0xa8] sm:%s211] %v248
                %v250 = vld [vmem:[%s218 + $0x21c] sm:%s211]
                %251 = vst [vmem:[%s219 + $0xb4] sm:%s211] %v250
                %v252 = vld [vmem:[%s218 + $0x240] sm:%s211]
                %253 = vst [vmem:[%s219 + $0xc0] sm:%s211] %v252
                %v254 = vld [vmem:[%s218 + $0x264] sm:%s211]
                %255 = vst [vmem:[%s219 + $0xcc] sm:%s211] %v254
                %v256 = vld [vmem:[%s218 + $0x288] sm:%s211]
                %257 = vst [vmem:[%s219 + $0xd8] sm:%s211] %v256
                %v258 = vld [vmem:[%s218 + $0x2ac] sm:%s211]
                %259 = vst [vmem:[%s219 + $0xe4] sm:%s211] %v258
                %v260 = vld [vmem:[%s218 + $0x2d0] sm:%s211]
                %261 = vst [vmem:[%s219 + $0xf0] sm:%s211] %v260
                %v262 = vld [vmem:[%s218 + $0x2f4] sm:%s211]
                %263 = vst [vmem:[%s219 + $0xfc] sm:%s211] %v262
                %v264 = vld [vmem:[%s218 + $0x318] sm:%s211]
                %265 = vst [vmem:[%s219 + $0x108] sm:%s211] %v264
                %v266 = vld [vmem:[%s218 + $0x33c] sm:%s211]
                %267 = vst [vmem:[%s219 + $0x114] sm:%s211] %v266
                %v268 = vld [vmem:[%s218 + $0x360] sm:%s211]
                %269 = vst [vmem:[%s219 + $0x120] sm:%s211] %v268
                %v270 = vld [vmem:[%s218 + $0x384] sm:%s211]
                %271 = vst [vmem:[%s219 + $0x12c] sm:%s211] %v270
                %v272 = vld [vmem:[%s218 + $0x3a8] sm:%s211]
                %273 = vst [vmem:[%s219 + $0x138] sm:%s211] %v272
                %v274 = vld [vmem:[%s218 + $0x3cc] sm:%s211]
                %275 = vst [vmem:[%s219 + $0x144] sm:%s211] %v274
                %v276 = vld [vmem:[%s218 + $0x3f0] sm:%s211]
                %277 = vst [vmem:[%s219 + $0x150] sm:%s211] %v276
                %v278 = vld [vmem:[%s218 + $0x414] sm:%s211]
                %279 = vst [vmem:[%s219 + $0x15c] sm:%s211] %v278
                %v280 = vld [vmem:[%s218 + $0x438] sm:%s211]
                %281 = vst [vmem:[%s219 + $0x168] sm:%s211] %v280
                %v282 = vld [vmem:[%s218 + $0x45c] sm:%s211]
                %283 = vst [vmem:[%s219 + $0x174] sm:%s211] %v282
              $region40: #{scale_prediction_forward.2} parent=27 // loop_footer
                %s217 = sadd.s32 1, %s213
              $region41: #{scale_prediction_forward.2} parent=27 // loop_footer_branch
                %212 = sbr.rel target = $region37
              $region42: #{scale_prediction_forward.2} parent=27 // loop_exit
                _
            $region28: #{scale_prediction_forward.2} parent=23 // pred_fallthru
              _
          $region24: #{scale_prediction_forward.2} parent=19 // pred_fallthru
            _
          %284 = vnop
        $region20: #{scale_prediction_forward.2} parent=15 // pred_fallthru
          _
        // Predicated region
        $region43: #{scale_prediction_forward.2} parent=15 // pred_check
          %p285 = pneg %p68
        $region44: #{scale_prediction_forward.2} parent=15 // pred_check_branch
          %287 = sbr.rel (%p285) target = $region46
        $region45: #{scale_prediction_forward.2} parent=15 // pred_region
          %s288 = smul.u32 48, %s16
          %p289 = scmp.lt.s32.totalorder %s288, 143
          %s290 = scalar_select %p289, %s288, 143
          %s291 = smul.addr %s290, 2
          %s292 = smul.addr %s291, 4
          %s293 = scalar_lea.vmem %s1, %s292
          %s294 = smul.u32 48, %s16
        $region46: #{scale_prediction_forward.2} parent=15 // pred_fallthru
          _
      $region16: #{scale_prediction_forward.2} parent=5 // pred_fallthru
        _
      %p295 = scmp.le.s32.totalorder 1, %s8
      %p296 = scmp.lt.s32.totalorder %s8, 7
      %p297 = pnand %p295, %p296
      %p298 = pneg %p297
      // Predicated region
      $region47: #{scale_prediction_forward.2} parent=5 // pred_check
        _
      $region48: #{scale_prediction_forward.2} parent=5 // pred_check_branch
        %300 = sbr.rel (%p297) target = $region50
      $region49: #{scale_prediction_forward.2} parent=5 // pred_region
        %s301 = ssub.s32 %s8, 1
        %s302 = sand.u32 %s35, 1
        %s303 = sand.u32 %s35, 1
        %s304 = smul.addr %s303, 384
        %s305 = scalar_lea.vmem [#allocation2], %s304
        // Predicated region
        $region51: #{scale_prediction_forward.2} parent=49 // pred_check
          %p306 = pneg %p48
        $region52: #{scale_prediction_forward.2} parent=49 // pred_check_branch
          %308 = sbr.rel (%p306) target = $region54
        $region53: #{scale_prediction_forward.2} parent=49 // pred_region
          _
        $region54: #{scale_prediction_forward.2} parent=49 // pred_fallthru
          _
        %s309 = sand.u32 %s35, 1
        %s310 = sand.u32 %s35, 1
        %s311 = smul.addr %s310, 384
        %s312 = scalar_lea.vmem [#allocation2], %s311
        %p313 = pneg %p48
        %p314 = pneg %p45
        %s315 = smul.u32 48, %s18
        %p316 = scmp.lt.s32.totalorder %s315, 143
        %s317 = scalar_select %p316, %s315, 143
        %s318 = smul.addr %s317, 2
        %s319 = smul.addr %s318, 4
        %s320 = scalar_lea.vmem %s1, %s319
        %p321 = pneg %p74
        %p322 = pneg %p71
        %p323 = pneg %p100
        %p324 = pneg %p97
        %s325 = smul.u32 32, %s17
        %p326 = scmp.lt.s32.totalorder %s325, 63
        %s327 = scalar_select %p326, %s325, 63
        %s328 = smul.addr %s327, 2
        %s329 = smul.addr %s328, 8
        %s330 = scalar_lea.vmem %s2, %s329
        %s331 = smul.u32 32, %s17
        %s332 = smul.u32 3, %s18
        %s333 = smul.u32 48, %s18
        %p334 = scmp.lt.s32.totalorder %s333, 143
        %s335 = scalar_select %p334, %s333, 143
        %s336 = smul.addr %s335, 2
        %s337 = smul.addr %s336, 4
        %s338 = scalar_lea.vmem %s1, %s337
        %s339 = smul.u32 48, %s18
        %s340 = smul.u32 32, %s17
        %p341 = scmp.lt.s32.totalorder %s340, 63
        %s342 = scalar_select %p341, %s340, 63
        %s343 = smul.addr %s342, 2
        %s344 = smul.addr %s343, 8
        %s345 = scalar_lea.vmem %s2, %s344
        %s346 = smul.u32 32, %s17
        %p347 = scmp.eq.s32.totalorder %s18, 0
        // Predicated region
        $region55: #{scale_prediction_forward.2} parent=49 // pred_check
          %p348 = pneg %p347
        $region56: #{scale_prediction_forward.2} parent=49 // pred_check_branch
          %350 = sbr.rel (%p348) target = $region58
        $region57: #{scale_prediction_forward.2} parent=49 // pred_region
          %351 = vst [vmem:[%s345] sm:$0xff] 0.0
          %352 = vst [vmem:[%s345 + $0x8] sm:$0xff] 0.0
          %353 = vst [vmem:[%s345 + $0x10] sm:$0xff] 0.0
          %354 = vst [vmem:[%s345 + $0x18] sm:$0xff] 0.0
          %355 = vst [vmem:[%s345 + $0x20] sm:$0xff] 0.0
          %356 = vst [vmem:[%s345 + $0x28] sm:$0xff] 0.0
          %357 = vst [vmem:[%s345 + $0x30] sm:$0xff] 0.0
          %358 = vst [vmem:[%s345 + $0x38] sm:$0xff] 0.0
          %359 = vst [vmem:[%s345 + $0x40] sm:$0xff] 0.0
          %360 = vst [vmem:[%s345 + $0x48] sm:$0xff] 0.0
          %361 = vst [vmem:[%s345 + $0x50] sm:$0xff] 0.0
          %362 = vst [vmem:[%s345 + $0x58] sm:$0xff] 0.0
          %363 = vst [vmem:[%s345 + $0x60] sm:$0xff] 0.0
          %364 = vst [vmem:[%s345 + $0x68] sm:$0xff] 0.0
          %365 = vst [vmem:[%s345 + $0x70] sm:$0xff] 0.0
          %366 = vst [vmem:[%s345 + $0x78] sm:$0xff] 0.0
          %367 = vst [vmem:[%s345 + $0x80] sm:$0xff] 0.0
          %368 = vst [vmem:[%s345 + $0x88] sm:$0xff] 0.0
          %369 = vst [vmem:[%s345 + $0x90] sm:$0xff] 0.0
          %370 = vst [vmem:[%s345 + $0x98] sm:$0xff] 0.0
          %371 = vst [vmem:[%s345 + $0xa0] sm:$0xff] 0.0
          %372 = vst [vmem:[%s345 + $0xa8] sm:$0xff] 0.0
          %373 = vst [vmem:[%s345 + $0xb0] sm:$0xff] 0.0
          %374 = vst [vmem:[%s345 + $0xb8] sm:$0xff] 0.0
          %375 = vst [vmem:[%s345 + $0xc0] sm:$0xff] 0.0
          %376 = vst [vmem:[%s345 + $0xc8] sm:$0xff] 0.0
          %377 = vst [vmem:[%s345 + $0xd0] sm:$0xff] 0.0
          %378 = vst [vmem:[%s345 + $0xd8] sm:$0xff] 0.0
          %379 = vst [vmem:[%s345 + $0xe0] sm:$0xff] 0.0
          %380 = vst [vmem:[%s345 + $0xe8] sm:$0xff] 0.0
          %381 = vst [vmem:[%s345 + $0xf0] sm:$0xff] 0.0
          %382 = vst [vmem:[%s345 + $0xf8] sm:$0xff] 0.0
          %383 = vst [vmem:[%s345 + $0x100] sm:$0xff] 0.0
          %384 = vst [vmem:[%s345 + $0x108] sm:$0xff] 0.0
          %385 = vst [vmem:[%s345 + $0x110] sm:$0xff] 0.0
          %386 = vst [vmem:[%s345 + $0x118] sm:$0xff] 0.0
          %387 = vst [vmem:[%s345 + $0x120] sm:$0xff] 0.0
          %388 = vst [vmem:[%s345 + $0x128] sm:$0xff] 0.0
          %389 = vst [vmem:[%s345 + $0x130] sm:$0xff] 0.0
          %390 = vst [vmem:[%s345 + $0x138] sm:$0xff] 0.0
          %391 = vst [vmem:[%s345 + $0x140] sm:$0xff] 0.0
          %392 = vst [vmem:[%s345 + $0x148] sm:$0xff] 0.0
          %393 = vst [vmem:[%s345 + $0x150] sm:$0xff] 0.0
          %394 = vst [vmem:[%s345 + $0x158] sm:$0xff] 0.0
          %395 = vst [vmem:[%s345 + $0x160] sm:$0xff] 0.0
          %396 = vst [vmem:[%s345 + $0x168] sm:$0xff] 0.0
          %397 = vst [vmem:[%s345 + $0x170] sm:$0xff] 0.0
          %398 = vst [vmem:[%s345 + $0x178] sm:$0xff] 0.0
          %399 = vst [vmem:[%s345 + $0x180] sm:$0xff] 0.0
          %400 = vst [vmem:[%s345 + $0x188] sm:$0xff] 0.0
          %401 = vst [vmem:[%s345 + $0x190] sm:$0xff] 0.0
          %402 = vst [vmem:[%s345 + $0x198] sm:$0xff] 0.0
          %403 = vst [vmem:[%s345 + $0x1a0] sm:$0xff] 0.0
          %404 = vst [vmem:[%s345 + $0x1a8] sm:$0xff] 0.0
          %405 = vst [vmem:[%s345 + $0x1b0] sm:$0xff] 0.0
          %406 = vst [vmem:[%s345 + $0x1b8] sm:$0xff] 0.0
          %407 = vst [vmem:[%s345 + $0x1c0] sm:$0xff] 0.0
          %408 = vst [vmem:[%s345 + $0x1c8] sm:$0xff] 0.0
          %409 = vst [vmem:[%s345 + $0x1d0] sm:$0xff] 0.0
          %410 = vst [vmem:[%s345 + $0x1d8] sm:$0xff] 0.0
          %411 = vst [vmem:[%s345 + $0x1e0] sm:$0xff] 0.0
          %412 = vst [vmem:[%s345 + $0x1e8] sm:$0xff] 0.0
          %413 = vst [vmem:[%s345 + $0x1f0] sm:$0xff] 0.0
          %414 = vst [vmem:[%s345 + $0x1f8] sm:$0xff] 0.0
        $region58: #{scale_prediction_forward.2} parent=49 // pred_fallthru
          _
        %v415 = vld [vmem:[%s345] sm:$0xff]
        %v416 = vld [vmem:[%s345 + $0x8] sm:$0xff]
        %v417 = vld [vmem:[%s345 + $0x10] sm:$0xff]
        %v418 = vld [vmem:[%s345 + $0x18] sm:$0xff]
        %v419 = vld [vmem:[%s345 + $0x20] sm:$0xff]
        %v420 = vld [vmem:[%s345 + $0x28] sm:$0xff]
        %v421 = vld [vmem:[%s345 + $0x30] sm:$0xff]
        %v422 = vld [vmem:[%s345 + $0x38] sm:$0xff]
        %v423 = vld [vmem:[%s345 + $0x40] sm:$0xff]
        %v424 = vld [vmem:[%s345 + $0x48] sm:$0xff]
        %v425 = vld [vmem:[%s345 + $0x50] sm:$0xff]
        %v426 = vld [vmem:[%s345 + $0x58] sm:$0xff]
        %v427 = vld [vmem:[%s345 + $0x60] sm:$0xff]
        %v428 = vld [vmem:[%s345 + $0x68] sm:$0xff]
        %v429 = vld [vmem:[%s345 + $0x70] sm:$0xff]
        %v430 = vld [vmem:[%s345 + $0x78] sm:$0xff]
        %v431 = vld [vmem:[%s345 + $0x80] sm:$0xff]
        %v432 = vld [vmem:[%s345 + $0x88] sm:$0xff]
        %v433 = vld [vmem:[%s345 + $0x90] sm:$0xff]
        %v434 = vld [vmem:[%s345 + $0x98] sm:$0xff]
        %v435 = vld [vmem:[%s345 + $0xa0] sm:$0xff]
        %v436 = vld [vmem:[%s345 + $0xa8] sm:$0xff]
        %v437 = vld [vmem:[%s345 + $0xb0] sm:$0xff]
        %v438 = vld [vmem:[%s345 + $0xb8] sm:$0xff]
        %v439 = vld [vmem:[%s345 + $0xc0] sm:$0xff]
        %v440 = vld [vmem:[%s345 + $0xc8] sm:$0xff]
        %v441 = vld [vmem:[%s345 + $0xd0] sm:$0xff]
        %v442 = vld [vmem:[%s345 + $0xd8] sm:$0xff]
        %v443 = vld [vmem:[%s345 + $0xe0] sm:$0xff]
        %v444 = vld [vmem:[%s345 + $0xe8] sm:$0xff]
        %v445 = vld [vmem:[%s345 + $0xf0] sm:$0xff]
        %v446 = vld [vmem:[%s345 + $0xf8] sm:$0xff]
        %v447 = vld [vmem:[%s345 + $0x100] sm:$0xff]
        %v448 = vld [vmem:[%s345 + $0x108] sm:$0xff]
        %v449 = vld [vmem:[%s345 + $0x110] sm:$0xff]
        %v450 = vld [vmem:[%s345 + $0x118] sm:$0xff]
        %v451 = vld [vmem:[%s345 + $0x120] sm:$0xff]
        %v452 = vld [vmem:[%s345 + $0x128] sm:$0xff]
        %v453 = vld [vmem:[%s345 + $0x130] sm:$0xff]
        %v454 = vld [vmem:[%s345 + $0x138] sm:$0xff]
        %v455 = vld [vmem:[%s345 + $0x140] sm:$0xff]
        %v456 = vld [vmem:[%s345 + $0x148] sm:$0xff]
        %v457 = vld [vmem:[%s345 + $0x150] sm:$0xff]
        %v458 = vld [vmem:[%s345 + $0x158] sm:$0xff]
        %v459 = vld [vmem:[%s345 + $0x160] sm:$0xff]
        %v460 = vld [vmem:[%s345 + $0x168] sm:$0xff]
        %v461 = vld [vmem:[%s345 + $0x170] sm:$0xff]
        %v462 = vld [vmem:[%s345 + $0x178] sm:$0xff]
        %v463 = vld [vmem:[%s345 + $0x180] sm:$0xff]
        %v464 = vld [vmem:[%s345 + $0x188] sm:$0xff]
        %v465 = vld [vmem:[%s345 + $0x190] sm:$0xff]
        %v466 = vld [vmem:[%s345 + $0x198] sm:$0xff]
        %v467 = vld [vmem:[%s345 + $0x1a0] sm:$0xff]
        %v468 = vld [vmem:[%s345 + $0x1a8] sm:$0xff]
        %v469 = vld [vmem:[%s345 + $0x1b0] sm:$0xff]
        %v470 = vld [vmem:[%s345 + $0x1b8] sm:$0xff]
        %v471 = vld [vmem:[%s345 + $0x1c0] sm:$0xff]
        %v472 = vld [vmem:[%s345 + $0x1c8] sm:$0xff]
        %v473 = vld [vmem:[%s345 + $0x1d0] sm:$0xff]
        %v474 = vld [vmem:[%s345 + $0x1d8] sm:$0xff]
        %v475 = vld [vmem:[%s345 + $0x1e0] sm:$0xff]
        %v476 = vld [vmem:[%s345 + $0x1e8] sm:$0xff]
        %v477 = vld [vmem:[%s345 + $0x1f0] sm:$0xff]
        %v478 = vld [vmem:[%s345 + $0x1f8] sm:$0xff]
        %v479 = vld [vmem:[%s305] sm:$0xff]
        %v480 = vld [vmem:[%s305 + $0x8] sm:$0xf]
        %v481 = vld [vmem:[%s305 + $0xc] sm:$0xff]
        %v482 = vld [vmem:[%s305 + $0x14] sm:$0xf]
        %v483 = vld [vmem:[%s305 + $0x18] sm:$0xff]
        %v484 = vld [vmem:[%s305 + $0x20] sm:$0xf]
        %v485 = vld [vmem:[%s305 + $0x24] sm:$0xff]
        %v486 = vld [vmem:[%s305 + $0x2c] sm:$0xf]
        %v487 = vld [vmem:[%s305 + $0x30] sm:$0xff]
        %v488 = vld [vmem:[%s305 + $0x38] sm:$0xf]
        %v489 = vld [vmem:[%s305 + $0x3c] sm:$0xff]
        %v490 = vld [vmem:[%s305 + $0x44] sm:$0xf]
        %v491 = vld [vmem:[%s305 + $0x48] sm:$0xff]
        %v492 = vld [vmem:[%s305 + $0x50] sm:$0xf]
        %v493 = vld [vmem:[%s305 + $0x54] sm:$0xff]
        %v494 = vld [vmem:[%s305 + $0x5c] sm:$0xf]
        %v495 = vld [vmem:[%s305 + $0x60] sm:$0xff]
        %v496 = vld [vmem:[%s305 + $0x68] sm:$0xf]
        %v497 = vld [vmem:[%s305 + $0x6c] sm:$0xff]
        %v498 = vld [vmem:[%s305 + $0x74] sm:$0xf]
        %v499 = vld [vmem:[%s305 + $0x78] sm:$0xff]
        %v500 = vld [vmem:[%s305 + $0x80] sm:$0xf]
        %v501 = vld [vmem:[%s305 + $0x84] sm:$0xff]
        %v502 = vld [vmem:[%s305 + $0x8c] sm:$0xf]
        %v503 = vld [vmem:[%s305 + $0x90] sm:$0xff]
        %v504 = vld [vmem:[%s305 + $0x98] sm:$0xf]
        %v505 = vld [vmem:[%s305 + $0x9c] sm:$0xff]
        %v506 = vld [vmem:[%s305 + $0xa4] sm:$0xf]
        %v507 = vld [vmem:[%s305 + $0xa8] sm:$0xff]
        %v508 = vld [vmem:[%s305 + $0xb0] sm:$0xf]
        %v509 = vld [vmem:[%s305 + $0xb4] sm:$0xff]
        %v510 = vld [vmem:[%s305 + $0xbc] sm:$0xf]
        %v511 = vld [vmem:[%s305 + $0xc0] sm:$0xff]
        %v512 = vld [vmem:[%s305 + $0xc8] sm:$0xf]
        %v513 = vld [vmem:[%s305 + $0xcc] sm:$0xff]
        %v514 = vld [vmem:[%s305 + $0xd4] sm:$0xf]
        %v515 = vld [vmem:[%s305 + $0xd8] sm:$0xff]
        %v516 = vld [vmem:[%s305 + $0xe0] sm:$0xf]
        %v517 = vld [vmem:[%s305 + $0xe4] sm:$0xff]
        %v518 = vld [vmem:[%s305 + $0xec] sm:$0xf]
        %v519 = vld [vmem:[%s305 + $0xf0] sm:$0xff]
        %v520 = vld [vmem:[%s305 + $0xf8] sm:$0xf]
        %v521 = vld [vmem:[%s305 + $0xfc] sm:$0xff]
        %v522 = vld [vmem:[%s305 + $0x104] sm:$0xf]
        %v523 = vld [vmem:[%s305 + $0x108] sm:$0xff]
        %v524 = vld [vmem:[%s305 + $0x110] sm:$0xf]
        %v525 = vld [vmem:[%s305 + $0x114] sm:$0xff]
        %v526 = vld [vmem:[%s305 + $0x11c] sm:$0xf]
        %v527 = vld [vmem:[%s305 + $0x120] sm:$0xff]
        %v528 = vld [vmem:[%s305 + $0x128] sm:$0xf]
        %v529 = vld [vmem:[%s305 + $0x12c] sm:$0xff]
        %v530 = vld [vmem:[%s305 + $0x134] sm:$0xf]
        %v531 = vld [vmem:[%s305 + $0x138] sm:$0xff]
        %v532 = vld [vmem:[%s305 + $0x140] sm:$0xf]
        %v533 = vld [vmem:[%s305 + $0x144] sm:$0xff]
        %v534 = vld [vmem:[%s305 + $0x14c] sm:$0xf]
        %v535 = vld [vmem:[%s305 + $0x150] sm:$0xff]
        %v536 = vld [vmem:[%s305 + $0x158] sm:$0xf]
        %v537 = vld [vmem:[%s305 + $0x15c] sm:$0xff]
        %v538 = vld [vmem:[%s305 + $0x164] sm:$0xf]
        %v539 = vld [vmem:[%s305 + $0x168] sm:$0xff]
        %v540 = vld [vmem:[%s305 + $0x170] sm:$0xf]
        %v541 = vld [vmem:[%s305 + $0x174] sm:$0xff]
        %v542 = vld [vmem:[%s305 + $0x17c] sm:$0xf]
        %v543 = vld [vmem:[%s338] sm:$0xff]
        %v544 = vld [vmem:[%s338 + $0x8] sm:$0xff]
        %v545 = vld [vmem:[%s338 + $0x10] sm:$0xff]
        %v546 = vld [vmem:[%s338 + $0x18] sm:$0xff]
        %v547 = vld [vmem:[%s338 + $0x20] sm:$0xff]
        %v548 = vld [vmem:[%s338 + $0x28] sm:$0xff]
        %v549 = vld [vmem:[%s338 + $0x30] sm:$0xff]
        %v550 = vld [vmem:[%s338 + $0x38] sm:$0xff]
        %v551 = vld [vmem:[%s338 + $0x40] sm:$0xff]
        %v552 = vld [vmem:[%s338 + $0x48] sm:$0xff]
        %v553 = vld [vmem:[%s338 + $0x50] sm:$0xff]
        %v554 = vld [vmem:[%s338 + $0x58] sm:$0xff]
        %v555 = vld [vmem:[%s338 + $0x60] sm:$0xff]
        %v556 = vld [vmem:[%s338 + $0x68] sm:$0xff]
        %v557 = vld [vmem:[%s338 + $0x70] sm:$0xff]
        %v558 = vld [vmem:[%s338 + $0x78] sm:$0xff]
        %v559 = vld [vmem:[%s338 + $0x80] sm:$0xff]
        %v560 = vld [vmem:[%s338 + $0x88] sm:$0xff]
        %v561 = vld [vmem:[%s338 + $0x90] sm:$0xff]
        %v562 = vld [vmem:[%s338 + $0x98] sm:$0xff]
        %v563 = vld [vmem:[%s338 + $0xa0] sm:$0xff]
        %v564 = vld [vmem:[%s338 + $0xa8] sm:$0xff]
        %v565 = vld [vmem:[%s338 + $0xb0] sm:$0xff]
        %v566 = vld [vmem:[%s338 + $0xb8] sm:$0xff]
        %v567 = vld [vmem:[%s338 + $0xc0] sm:$0xff]
        %v568 = vld [vmem:[%s338 + $0xc8] sm:$0xff]
        %v569 = vld [vmem:[%s338 + $0xd0] sm:$0xff]
        %v570 = vld [vmem:[%s338 + $0xd8] sm:$0xff]
        %v571 = vld [vmem:[%s338 + $0xe0] sm:$0xff]
        %v572 = vld [vmem:[%s338 + $0xe8] sm:$0xff]
        %v573 = vld [vmem:[%s338 + $0xf0] sm:$0xff]
        %v574 = vld [vmem:[%s338 + $0xf8] sm:$0xff]
        %v575 = vld [vmem:[%s338 + $0x100] sm:$0xff]
        %v576 = vld [vmem:[%s338 + $0x108] sm:$0xff]
        %v577 = vld [vmem:[%s338 + $0x110] sm:$0xff]
        %v578 = vld [vmem:[%s338 + $0x118] sm:$0xff]
        %v579 = vld [vmem:[%s338 + $0x120] sm:$0xff]
        %v580 = vld [vmem:[%s338 + $0x128] sm:$0xff]
        %v581 = vld [vmem:[%s338 + $0x130] sm:$0xff]
        %v582 = vld [vmem:[%s338 + $0x138] sm:$0xff]
        %v583 = vld [vmem:[%s338 + $0x140] sm:$0xff]
        %v584 = vld [vmem:[%s338 + $0x148] sm:$0xff]
        %v585 = vld [vmem:[%s338 + $0x150] sm:$0xff]
        %v586 = vld [vmem:[%s338 + $0x158] sm:$0xff]
        %v587 = vld [vmem:[%s338 + $0x160] sm:$0xff]
        %v588 = vld [vmem:[%s338 + $0x168] sm:$0xff]
        %v589 = vld [vmem:[%s338 + $0x170] sm:$0xff]
        %v590 = vld [vmem:[%s338 + $0x178] sm:$0xff]
        %v655 = vunpack.c.l.b16 %v479
        %v656 = vunpack.c.h.b16 %v479
        %v657 = vunpack.c.l.b16 %v480
        %v658 = vunpack.c.l.b16 %v481
        %v659 = vunpack.c.h.b16 %v481
        %v660 = vunpack.c.l.b16 %v482
        %v661 = vunpack.c.l.b16 %v483
        %v662 = vunpack.c.h.b16 %v483
        %v663 = vunpack.c.l.b16 %v484
        %v664 = vunpack.c.l.b16 %v485
        %v665 = vunpack.c.h.b16 %v485
        %v666 = vunpack.c.l.b16 %v486
        %v667 = vunpack.c.l.b16 %v487
        %v668 = vunpack.c.h.b16 %v487
        %v669 = vunpack.c.l.b16 %v488
        %v670 = vunpack.c.l.b16 %v489
        %v671 = vunpack.c.h.b16 %v489
        %v672 = vunpack.c.l.b16 %v490
        %v673 = vunpack.c.l.b16 %v491
        %v674 = vunpack.c.h.b16 %v491
        %v675 = vunpack.c.l.b16 %v492
        %v676 = vunpack.c.l.b16 %v493
        %v677 = vunpack.c.h.b16 %v493
        %v678 = vunpack.c.l.b16 %v494
        %v679 = vunpack.c.l.b16 %v495
        %v680 = vunpack.c.h.b16 %v495
        %v681 = vunpack.c.l.b16 %v496
        %v682 = vunpack.c.l.b16 %v497
        %v683 = vunpack.c.h.b16 %v497
        %v684 = vunpack.c.l.b16 %v498
        %v685 = vunpack.c.l.b16 %v499
        %v686 = vunpack.c.h.b16 %v499
        %v687 = vunpack.c.l.b16 %v500
        %v688 = vunpack.c.l.b16 %v501
        %v689 = vunpack.c.h.b16 %v501
        %v690 = vunpack.c.l.b16 %v502
        %v691 = vunpack.c.l.b16 %v503
        %v692 = vunpack.c.h.b16 %v503
        %v693 = vunpack.c.l.b16 %v504
        %v694 = vunpack.c.l.b16 %v505
        %v695 = vunpack.c.h.b16 %v505
        %v696 = vunpack.c.l.b16 %v506
        %v697 = vunpack.c.l.b16 %v507
        %v698 = vunpack.c.h.b16 %v507
        %v699 = vunpack.c.l.b16 %v508
        %v700 = vunpack.c.l.b16 %v509
        %v701 = vunpack.c.h.b16 %v509
        %v702 = vunpack.c.l.b16 %v510
        %v703 = vunpack.c.l.b16 %v511
        %v704 = vunpack.c.h.b16 %v511
        %v705 = vunpack.c.l.b16 %v512
        %v706 = vunpack.c.l.b16 %v513
        %v707 = vunpack.c.h.b16 %v513
        %v708 = vunpack.c.l.b16 %v514
        %v709 = vunpack.c.l.b16 %v515
        %v710 = vunpack.c.h.b16 %v515
        %v711 = vunpack.c.l.b16 %v516
        %v712 = vunpack.c.l.b16 %v517
        %v713 = vunpack.c.h.b16 %v517
        %v714 = vunpack.c.l.b16 %v518
        %v715 = vunpack.c.l.b16 %v519
        %v716 = vunpack.c.h.b16 %v519
        %v717 = vunpack.c.l.b16 %v520
        %v718 = vunpack.c.l.b16 %v521
        %v719 = vunpack.c.h.b16 %v521
        %v720 = vunpack.c.l.b16 %v522
        %v721 = vunpack.c.l.b16 %v523
        %v722 = vunpack.c.h.b16 %v523
        %v723 = vunpack.c.l.b16 %v524
        %v724 = vunpack.c.l.b16 %v525
        %v725 = vunpack.c.h.b16 %v525
        %v726 = vunpack.c.l.b16 %v526
        %v727 = vunpack.c.l.b16 %v527
        %v728 = vunpack.c.h.b16 %v527
        %v729 = vunpack.c.l.b16 %v528
        %v730 = vunpack.c.l.b16 %v529
        %v731 = vunpack.c.h.b16 %v529
        %v732 = vunpack.c.l.b16 %v530
        %v733 = vunpack.c.l.b16 %v531
        %v734 = vunpack.c.h.b16 %v531
        %v735 = vunpack.c.l.b16 %v532
        %v736 = vunpack.c.l.b16 %v533
        %v737 = vunpack.c.h.b16 %v533
        %v738 = vunpack.c.l.b16 %v534
        %v739 = vunpack.c.l.b16 %v535
        %v740 = vunpack.c.h.b16 %v535
        %v741 = vunpack.c.l.b16 %v536
        %v742 = vunpack.c.l.b16 %v537
        %v743 = vunpack.c.h.b16 %v537
        %v744 = vunpack.c.l.b16 %v538
        %v745 = vunpack.c.l.b16 %v539
        %v746 = vunpack.c.h.b16 %v539
        %v747 = vunpack.c.l.b16 %v540
        %v748 = vunpack.c.l.b16 %v541
        %v749 = vunpack.c.h.b16 %v541
        %v750 = vunpack.c.l.b16 %v542
        %v751 = vpack.c.b16 %v658, %v655
        %v752 = vpack.c.b16 %v659, %v656
        %v753 = vpack.c.b16 %v660, %v657
        %v754 = vpack.c.b16 %v664, %v661
        %v755 = vpack.c.b16 %v665, %v662
        %v756 = vpack.c.b16 %v666, %v663
        %v757 = vpack.c.b16 %v670, %v667
        %v758 = vpack.c.b16 %v671, %v668
        %v759 = vpack.c.b16 %v672, %v669
        %v760 = vpack.c.b16 %v676, %v673
        %v761 = vpack.c.b16 %v677, %v674
        %v762 = vpack.c.b16 %v678, %v675
        %v763 = vpack.c.b16 %v682, %v679
        %v764 = vpack.c.b16 %v683, %v680
        %v765 = vpack.c.b16 %v684, %v681
        %v766 = vpack.c.b16 %v688, %v685
        %v767 = vpack.c.b16 %v689, %v686
        %v768 = vpack.c.b16 %v690, %v687
        %v769 = vpack.c.b16 %v694, %v691
        %v770 = vpack.c.b16 %v695, %v692
        %v771 = vpack.c.b16 %v696, %v693
        %v772 = vpack.c.b16 %v700, %v697
        %v773 = vpack.c.b16 %v701, %v698
        %v774 = vpack.c.b16 %v702, %v699
        %v775 = vpack.c.b16 %v706, %v703
        %v776 = vpack.c.b16 %v707, %v704
        %v777 = vpack.c.b16 %v708, %v705
        %v778 = vpack.c.b16 %v712, %v709
        %v779 = vpack.c.b16 %v713, %v710
        %v780 = vpack.c.b16 %v714, %v711
        %v781 = vpack.c.b16 %v718, %v715
        %v782 = vpack.c.b16 %v719, %v716
        %v783 = vpack.c.b16 %v720, %v717
        %v784 = vpack.c.b16 %v724, %v721
        %v785 = vpack.c.b16 %v725, %v722
        %v786 = vpack.c.b16 %v726, %v723
        %v787 = vpack.c.b16 %v730, %v727
        %v788 = vpack.c.b16 %v731, %v728
        %v789 = vpack.c.b16 %v732, %v729
        %v790 = vpack.c.b16 %v736, %v733
        %v791 = vpack.c.b16 %v737, %v734
        %v792 = vpack.c.b16 %v738, %v735
        %v793 = vpack.c.b16 %v742, %v739
        %v794 = vpack.c.b16 %v743, %v740
        %v795 = vpack.c.b16 %v744, %v741
        %v796 = vpack.c.b16 %v748, %v745
        %v797 = vpack.c.b16 %v749, %v746
        %v798 = vpack.c.b16 %v750, %v747
        %v895 = vunpack.c.l.b16 %v543
        %v896 = vunpack.c.h.b16 %v543
        %v897 = vunpack.c.l.b16 %v544
        %v898 = vunpack.c.h.b16 %v544
        %v899 = vunpack.c.l.b16 %v545
        %v900 = vunpack.c.h.b16 %v545
        %v901 = vunpack.c.l.b16 %v546
        %v902 = vunpack.c.h.b16 %v546
        %v903 = vunpack.c.l.b16 %v547
        %v904 = vunpack.c.h.b16 %v547
        %v905 = vunpack.c.l.b16 %v548
        %v906 = vunpack.c.h.b16 %v548
        %v907 = vunpack.c.l.b16 %v549
        %v908 = vunpack.c.h.b16 %v549
        %v909 = vunpack.c.l.b16 %v550
        %v910 = vunpack.c.h.b16 %v550
        %v911 = vunpack.c.l.b16 %v551
        %v912 = vunpack.c.h.b16 %v551
        %v913 = vunpack.c.l.b16 %v552
        %v914 = vunpack.c.h.b16 %v552
        %v915 = vunpack.c.l.b16 %v553
        %v916 = vunpack.c.h.b16 %v553
        %v917 = vunpack.c.l.b16 %v554
        %v918 = vunpack.c.h.b16 %v554
        %v919 = vunpack.c.l.b16 %v555
        %v920 = vunpack.c.h.b16 %v555
        %v921 = vunpack.c.l.b16 %v556
        %v922 = vunpack.c.h.b16 %v556
        %v923 = vunpack.c.l.b16 %v557
        %v924 = vunpack.c.h.b16 %v557
        %v925 = vunpack.c.l.b16 %v558
        %v926 = vunpack.c.h.b16 %v558
        %v927 = vunpack.c.l.b16 %v559
        %v928 = vunpack.c.h.b16 %v559
        %v929 = vunpack.c.l.b16 %v560
        %v930 = vunpack.c.h.b16 %v560
        %v931 = vunpack.c.l.b16 %v561
        %v932 = vunpack.c.h.b16 %v561
        %v933 = vunpack.c.l.b16 %v562
        %v934 = vunpack.c.h.b16 %v562
        %v935 = vunpack.c.l.b16 %v563
        %v936 = vunpack.c.h.b16 %v563
        %v937 = vunpack.c.l.b16 %v564
        %v938 = vunpack.c.h.b16 %v564
        %v939 = vunpack.c.l.b16 %v565
        %v940 = vunpack.c.h.b16 %v565
        %v941 = vunpack.c.l.b16 %v566
        %v942 = vunpack.c.h.b16 %v566
        %v943 = vunpack.c.l.b16 %v567
        %v944 = vunpack.c.h.b16 %v567
        %v945 = vunpack.c.l.b16 %v568
        %v946 = vunpack.c.h.b16 %v568
        %v947 = vunpack.c.l.b16 %v569
        %v948 = vunpack.c.h.b16 %v569
        %v949 = vunpack.c.l.b16 %v570
        %v950 = vunpack.c.h.b16 %v570
        %v951 = vunpack.c.l.b16 %v571
        %v952 = vunpack.c.h.b16 %v571
        %v953 = vunpack.c.l.b16 %v572
        %v954 = vunpack.c.h.b16 %v572
        %v955 = vunpack.c.l.b16 %v573
        %v956 = vunpack.c.h.b16 %v573
        %v957 = vunpack.c.l.b16 %v574
        %v958 = vunpack.c.h.b16 %v574
        %v959 = vunpack.c.l.b16 %v575
        %v960 = vunpack.c.h.b16 %v575
        %v961 = vunpack.c.l.b16 %v576
        %v962 = vunpack.c.h.b16 %v576
        %v963 = vunpack.c.l.b16 %v577
        %v964 = vunpack.c.h.b16 %v577
        %v965 = vunpack.c.l.b16 %v578
        %v966 = vunpack.c.h.b16 %v578
        %v967 = vunpack.c.l.b16 %v579
        %v968 = vunpack.c.h.b16 %v579
        %v969 = vunpack.c.l.b16 %v580
        %v970 = vunpack.c.h.b16 %v580
        %v971 = vunpack.c.l.b16 %v581
        %v972 = vunpack.c.h.b16 %v581
        %v973 = vunpack.c.l.b16 %v582
        %v974 = vunpack.c.h.b16 %v582
        %v975 = vunpack.c.l.b16 %v583
        %v976 = vunpack.c.h.b16 %v583
        %v977 = vunpack.c.l.b16 %v584
        %v978 = vunpack.c.h.b16 %v584
        %v979 = vunpack.c.l.b16 %v585
        %v980 = vunpack.c.h.b16 %v585
        %v981 = vunpack.c.l.b16 %v586
        %v982 = vunpack.c.h.b16 %v586
        %v983 = vunpack.c.l.b16 %v587
        %v984 = vunpack.c.h.b16 %v587
        %v985 = vunpack.c.l.b16 %v588
        %v986 = vunpack.c.h.b16 %v588
        %v987 = vunpack.c.l.b16 %v589
        %v988 = vunpack.c.h.b16 %v589
        %v989 = vunpack.c.l.b16 %v590
        %v990 = vunpack.c.h.b16 %v590
        %v991 = vpack.c.b16 %v897, %v895
        %v992 = vpack.c.b16 %v898, %v896
        %v993 = vpack.c.b16 %v901, %v899
        %v994 = vpack.c.b16 %v902, %v900
        %v995 = vpack.c.b16 %v905, %v903
        %v996 = vpack.c.b16 %v906, %v904
        %v997 = vpack.c.b16 %v909, %v907
        %v998 = vpack.c.b16 %v910, %v908
        %v999 = vpack.c.b16 %v913, %v911
        %v1000 = vpack.c.b16 %v914, %v912
        %v1001 = vpack.c.b16 %v917, %v915
        %v1002 = vpack.c.b16 %v918, %v916
        %v1003 = vpack.c.b16 %v921, %v919
        %v1004 = vpack.c.b16 %v922, %v920
        %v1005 = vpack.c.b16 %v925, %v923
        %v1006 = vpack.c.b16 %v926, %v924
        %v1007 = vpack.c.b16 %v929, %v927
        %v1008 = vpack.c.b16 %v930, %v928
        %v1009 = vpack.c.b16 %v933, %v931
        %v1010 = vpack.c.b16 %v934, %v932
        %v1011 = vpack.c.b16 %v937, %v935
        %v1012 = vpack.c.b16 %v938, %v936
        %v1013 = vpack.c.b16 %v941, %v939
        %v1014 = vpack.c.b16 %v942, %v940
        %v1015 = vpack.c.b16 %v945, %v943
        %v1016 = vpack.c.b16 %v946, %v944
        %v1017 = vpack.c.b16 %v949, %v947
        %v1018 = vpack.c.b16 %v950, %v948
        %v1019 = vpack.c.b16 %v953, %v951
        %v1020 = vpack.c.b16 %v954, %v952
        %v1021 = vpack.c.b16 %v957, %v955
        %v1022 = vpack.c.b16 %v958, %v956
        %v1023 = vpack.c.b16 %v961, %v959
        %v1024 = vpack.c.b16 %v962, %v960
        %v1025 = vpack.c.b16 %v965, %v963
        %v1026 = vpack.c.b16 %v966, %v964
        %v1027 = vpack.c.b16 %v969, %v967
        %v1028 = vpack.c.b16 %v970, %v968
        %v1029 = vpack.c.b16 %v973, %v971
        %v1030 = vpack.c.b16 %v974, %v972
        %v1031 = vpack.c.b16 %v977, %v975
        %v1032 = vpack.c.b16 %v978, %v976
        %v1033 = vpack.c.b16 %v981, %v979
        %v1034 = vpack.c.b16 %v982, %v980
        %v1035 = vpack.c.b16 %v985, %v983
        %v1036 = vpack.c.b16 %v986, %v984
        %v1037 = vpack.c.b16 %v989, %v987
        %v1038 = vpack.c.b16 %v990, %v988
        %1087 = vmatpush.bf16.msra.mxu0 %v1005
        %1088 = vmatpush.bf16.msra.mxu0 %v1003
        %1089 = vmatpush.bf16.msra.mxu0 %v1001
        %1090 = vmatpush.bf16.msra.mxu0 %v999
        %1091 = vmatpush.bf16.msra.mxu0 %v997
        %1092 = vmatpush.bf16.msra.mxu0 %v995
        %1093 = vmatpush.bf16.msra.mxu0 %v993
        %1094 = vmatpush.bf16.msra.mxu0 %v991
        %1095 = vmatmul.bf16.gmra.mxu0 %v751
        %v1096 = vpop.f32.mrf.mxu0
        %v1097 = vadd.f32 0.0, %v1096
        %v1098 = vpop.f32.mrf.mxu0
        %v1099 = vadd.f32 0.0, %v1098
        %1100 = vmatmul.bf16.gmra.mxu0 %v754
        %v1101 = vpop.f32.mrf.mxu0
        %v1102 = vadd.f32 0.0, %v1101
        %v1103 = vpop.f32.mrf.mxu0
        %v1104 = vadd.f32 0.0, %v1103
        %1105 = vmatmul.bf16.gmra.mxu0 %v757
        %v1106 = vpop.f32.mrf.mxu0
        %v1107 = vadd.f32 0.0, %v1106
        %v1108 = vpop.f32.mrf.mxu0
        %v1109 = vadd.f32 0.0, %v1108
        %1110 = vmatmul.bf16.gmra.mxu0 %v760
        %v1111 = vpop.f32.mrf.mxu0
        %v1112 = vadd.f32 0.0, %v1111
        %v1113 = vpop.f32.mrf.mxu0
        %v1114 = vadd.f32 0.0, %v1113
        %1115 = vmatmul.bf16.gmra.mxu0 %v763
        %v1116 = vpop.f32.mrf.mxu0
        %v1117 = vadd.f32 0.0, %v1116
        %v1118 = vpop.f32.mrf.mxu0
        %v1119 = vadd.f32 0.0, %v1118
        %1120 = vmatmul.bf16.gmra.mxu0 %v766
        %v1121 = vpop.f32.mrf.mxu0
        %v1122 = vadd.f32 0.0, %v1121
        %v1123 = vpop.f32.mrf.mxu0
        %v1124 = vadd.f32 0.0, %v1123
        %1125 = vmatmul.bf16.gmra.mxu0 %v769
        %v1126 = vpop.f32.mrf.mxu0
        %v1127 = vadd.f32 0.0, %v1126
        %v1128 = vpop.f32.mrf.mxu0
        %v1129 = vadd.f32 0.0, %v1128
        %1130 = vmatmul.bf16.gmra.mxu0 %v772
        %v1131 = vpop.f32.mrf.mxu0
        %v1132 = vadd.f32 0.0, %v1131
        %v1133 = vpop.f32.mrf.mxu0
        %v1134 = vadd.f32 0.0, %v1133
        %1135 = vmatmul.bf16.gmra.mxu0 %v775
        %v1136 = vpop.f32.mrf.mxu0
        %v1137 = vadd.f32 0.0, %v1136
        %v1138 = vpop.f32.mrf.mxu0
        %v1139 = vadd.f32 0.0, %v1138
        %1140 = vmatmul.bf16.gmra.mxu0 %v778
        %v1141 = vpop.f32.mrf.mxu0
        %v1142 = vadd.f32 0.0, %v1141
        %v1143 = vpop.f32.mrf.mxu0
        %v1144 = vadd.f32 0.0, %v1143
        %1145 = vmatmul.bf16.gmra.mxu0 %v781
        %v1146 = vpop.f32.mrf.mxu0
        %v1147 = vadd.f32 0.0, %v1146
        %v1148 = vpop.f32.mrf.mxu0
        %v1149 = vadd.f32 0.0, %v1148
        %1150 = vmatmul.bf16.gmra.mxu0 %v784
        %v1151 = vpop.f32.mrf.mxu0
        %v1152 = vadd.f32 0.0, %v1151
        %v1153 = vpop.f32.mrf.mxu0
        %v1154 = vadd.f32 0.0, %v1153
        %1155 = vmatmul.bf16.gmra.mxu0 %v787
        %v1156 = vpop.f32.mrf.mxu0
        %v1157 = vadd.f32 0.0, %v1156
        %v1158 = vpop.f32.mrf.mxu0
        %v1159 = vadd.f32 0.0, %v1158
        %1160 = vmatmul.bf16.gmra.mxu0 %v790
        %v1161 = vpop.f32.mrf.mxu0
        %v1162 = vadd.f32 0.0, %v1161
        %v1163 = vpop.f32.mrf.mxu0
        %v1164 = vadd.f32 0.0, %v1163
        %1165 = vmatmul.bf16.gmra.mxu0 %v793
        %v1166 = vpop.f32.mrf.mxu0
        %v1167 = vadd.f32 0.0, %v1166
        %v1168 = vpop.f32.mrf.mxu0
        %v1169 = vadd.f32 0.0, %v1168
        %1170 = vmatmul.bf16.gmra.mxu0 %v796
        %v1171 = vpop.f32.mrf.mxu0
        %v1172 = vadd.f32 0.0, %v1171
        %v1173 = vpop.f32.mrf.mxu0
        %v1174 = vadd.f32 0.0, %v1173
        %1175 = vdwg.mxu0
        %1176 = vmatpush.bf16.msra.mxu0 %v1021
        %1177 = vmatpush.bf16.msra.mxu0 %v1019
        %1178 = vmatpush.bf16.msra.mxu0 %v1017
        %1179 = vmatpush.bf16.msra.mxu0 %v1015
        %1180 = vmatpush.bf16.msra.mxu0 %v1013
        %1181 = vmatpush.bf16.msra.mxu0 %v1011
        %1182 = vmatpush.bf16.msra.mxu0 %v1009
        %1183 = vmatpush.bf16.msra.mxu0 %v1007
        %1184 = vmatmul.bf16.gmra.mxu0 %v752
        %v1185 = vpop.f32.mrf.mxu0
        %v1186 = vadd.f32 %v1097, %v1185
        %v1187 = vpop.f32.mrf.mxu0
        %v1188 = vadd.f32 %v1099, %v1187
        %1189 = vmatmul.bf16.gmra.mxu0 %v755
        %v1190 = vpop.f32.mrf.mxu0
        %v1191 = vadd.f32 %v1102, %v1190
        %v1192 = vpop.f32.mrf.mxu0
        %v1193 = vadd.f32 %v1104, %v1192
        %1194 = vmatmul.bf16.gmra.mxu0 %v758
        %v1195 = vpop.f32.mrf.mxu0
        %v1196 = vadd.f32 %v1107, %v1195
        %v1197 = vpop.f32.mrf.mxu0
        %v1198 = vadd.f32 %v1109, %v1197
        %1199 = vmatmul.bf16.gmra.mxu0 %v761
        %v1200 = vpop.f32.mrf.mxu0
        %v1201 = vadd.f32 %v1112, %v1200
        %v1202 = vpop.f32.mrf.mxu0
        %v1203 = vadd.f32 %v1114, %v1202
        %1204 = vmatmul.bf16.gmra.mxu0 %v764
        %v1205 = vpop.f32.mrf.mxu0
        %v1206 = vadd.f32 %v1117, %v1205
        %v1207 = vpop.f32.mrf.mxu0
        %v1208 = vadd.f32 %v1119, %v1207
        %1209 = vmatmul.bf16.gmra.mxu0 %v767
        %v1210 = vpop.f32.mrf.mxu0
        %v1211 = vadd.f32 %v1122, %v1210
        %v1212 = vpop.f32.mrf.mxu0
        %v1213 = vadd.f32 %v1124, %v1212
        %1214 = vmatmul.bf16.gmra.mxu0 %v770
        %v1215 = vpop.f32.mrf.mxu0
        %v1216 = vadd.f32 %v1127, %v1215
        %v1217 = vpop.f32.mrf.mxu0
        %v1218 = vadd.f32 %v1129, %v1217
        %1219 = vmatmul.bf16.gmra.mxu0 %v773
        %v1220 = vpop.f32.mrf.mxu0
        %v1221 = vadd.f32 %v1132, %v1220
        %v1222 = vpop.f32.mrf.mxu0
        %v1223 = vadd.f32 %v1134, %v1222
        %1224 = vmatmul.bf16.gmra.mxu0 %v776
        %v1225 = vpop.f32.mrf.mxu0
        %v1226 = vadd.f32 %v1137, %v1225
        %v1227 = vpop.f32.mrf.mxu0
        %v1228 = vadd.f32 %v1139, %v1227
        %1229 = vmatmul.bf16.gmra.mxu0 %v779
        %v1230 = vpop.f32.mrf.mxu0
        %v1231 = vadd.f32 %v1142, %v1230
        %v1232 = vpop.f32.mrf.mxu0
        %v1233 = vadd.f32 %v1144, %v1232
        %1234 = vmatmul.bf16.gmra.mxu0 %v782
        %v1235 = vpop.f32.mrf.mxu0
        %v1236 = vadd.f32 %v1147, %v1235
        %v1237 = vpop.f32.mrf.mxu0
        %v1238 = vadd.f32 %v1149, %v1237
        %1239 = vmatmul.bf16.gmra.mxu0 %v785
        %v1240 = vpop.f32.mrf.mxu0
        %v1241 = vadd.f32 %v1152, %v1240
        %v1242 = vpop.f32.mrf.mxu0
        %v1243 = vadd.f32 %v1154, %v1242
        %1244 = vmatmul.bf16.gmra.mxu0 %v788
        %v1245 = vpop.f32.mrf.mxu0
        %v1246 = vadd.f32 %v1157, %v1245
        %v1247 = vpop.f32.mrf.mxu0
        %v1248 = vadd.f32 %v1159, %v1247
        %1249 = vmatmul.bf16.gmra.mxu0 %v791
        %v1250 = vpop.f32.mrf.mxu0
        %v1251 = vadd.f32 %v1162, %v1250
        %v1252 = vpop.f32.mrf.mxu0
        %v1253 = vadd.f32 %v1164, %v1252
        %1254 = vmatmul.bf16.gmra.mxu0 %v794
        %v1255 = vpop.f32.mrf.mxu0
        %v1256 = vadd.f32 %v1167, %v1255
        %v1257 = vpop.f32.mrf.mxu0
        %v1258 = vadd.f32 %v1169, %v1257
        %1259 = vmatmul.bf16.gmra.mxu0 %v797
        %v1260 = vpop.f32.mrf.mxu0
        %v1261 = vadd.f32 %v1172, %v1260
        %v1262 = vpop.f32.mrf.mxu0
        %v1263 = vadd.f32 %v1174, %v1262
        %1264 = vdwg.mxu0
        %1265 = vmatpush.bf16.msra.mxu0 %v1037
        %1266 = vmatpush.bf16.msra.mxu0 %v1035
        %1267 = vmatpush.bf16.msra.mxu0 %v1033
        %1268 = vmatpush.bf16.msra.mxu0 %v1031
        %1269 = vmatpush.bf16.msra.mxu0 %v1029
        %1270 = vmatpush.bf16.msra.mxu0 %v1027
        %1271 = vmatpush.bf16.msra.mxu0 %v1025
        %1272 = vmatpush.bf16.msra.mxu0 %v1023
        %1273 = vmatmul.bf16.gmra.mxu0 %v753
        %v1274 = vpop.f32.mrf.mxu0
        %v1275 = vadd.f32 %v1186, %v1274
        %v1276 = vpop.f32.mrf.mxu0
        %v1277 = vadd.f32 %v1188, %v1276
        %1278 = vmatmul.bf16.gmra.mxu0 %v756
        %v1279 = vpop.f32.mrf.mxu0
        %v1280 = vadd.f32 %v1191, %v1279
        %v1281 = vpop.f32.mrf.mxu0
        %v1282 = vadd.f32 %v1193, %v1281
        %1283 = vmatmul.bf16.gmra.mxu0 %v759
        %v1284 = vpop.f32.mrf.mxu0
        %v1285 = vadd.f32 %v1196, %v1284
        %v1286 = vpop.f32.mrf.mxu0
        %v1287 = vadd.f32 %v1198, %v1286
        %1288 = vmatmul.bf16.gmra.mxu0 %v762
        %v1289 = vpop.f32.mrf.mxu0
        %v1290 = vadd.f32 %v1201, %v1289
        %v1291 = vpop.f32.mrf.mxu0
        %v1292 = vadd.f32 %v1203, %v1291
        %1293 = vmatmul.bf16.gmra.mxu0 %v765
        %v1294 = vpop.f32.mrf.mxu0
        %v1295 = vadd.f32 %v1206, %v1294
        %v1296 = vpop.f32.mrf.mxu0
        %v1297 = vadd.f32 %v1208, %v1296
        %1298 = vmatmul.bf16.gmra.mxu0 %v768
        %v1299 = vpop.f32.mrf.mxu0
        %v1300 = vadd.f32 %v1211, %v1299
        %v1301 = vpop.f32.mrf.mxu0
        %v1302 = vadd.f32 %v1213, %v1301
        %1303 = vmatmul.bf16.gmra.mxu0 %v771
        %v1304 = vpop.f32.mrf.mxu0
        %v1305 = vadd.f32 %v1216, %v1304
        %v1306 = vpop.f32.mrf.mxu0
        %v1307 = vadd.f32 %v1218, %v1306
        %1308 = vmatmul.bf16.gmra.mxu0 %v774
        %v1309 = vpop.f32.mrf.mxu0
        %v1310 = vadd.f32 %v1221, %v1309
        %v1311 = vpop.f32.mrf.mxu0
        %v1312 = vadd.f32 %v1223, %v1311
        %1313 = vmatmul.bf16.gmra.mxu0 %v777
        %v1314 = vpop.f32.mrf.mxu0
        %v1315 = vadd.f32 %v1226, %v1314
        %v1316 = vpop.f32.mrf.mxu0
        %v1317 = vadd.f32 %v1228, %v1316
        %1318 = vmatmul.bf16.gmra.mxu0 %v780
        %v1319 = vpop.f32.mrf.mxu0
        %v1320 = vadd.f32 %v1231, %v1319
        %v1321 = vpop.f32.mrf.mxu0
        %v1322 = vadd.f32 %v1233, %v1321
        %1323 = vmatmul.bf16.gmra.mxu0 %v783
        %v1324 = vpop.f32.mrf.mxu0
        %v1325 = vadd.f32 %v1236, %v1324
        %v1326 = vpop.f32.mrf.mxu0
        %v1327 = vadd.f32 %v1238, %v1326
        %1328 = vmatmul.bf16.gmra.mxu0 %v786
        %v1329 = vpop.f32.mrf.mxu0
        %v1330 = vadd.f32 %v1241, %v1329
        %v1331 = vpop.f32.mrf.mxu0
        %v1332 = vadd.f32 %v1243, %v1331
        %1333 = vmatmul.bf16.gmra.mxu0 %v789
        %v1334 = vpop.f32.mrf.mxu0
        %v1335 = vadd.f32 %v1246, %v1334
        %v1336 = vpop.f32.mrf.mxu0
        %v1337 = vadd.f32 %v1248, %v1336
        %1338 = vmatmul.bf16.gmra.mxu0 %v792
        %v1339 = vpop.f32.mrf.mxu0
        %v1340 = vadd.f32 %v1251, %v1339
        %v1341 = vpop.f32.mrf.mxu0
        %v1342 = vadd.f32 %v1253, %v1341
        %1343 = vmatmul.bf16.gmra.mxu0 %v795
        %v1344 = vpop.f32.mrf.mxu0
        %v1345 = vadd.f32 %v1256, %v1344
        %v1346 = vpop.f32.mrf.mxu0
        %v1347 = vadd.f32 %v1258, %v1346
        %1348 = vmatmul.bf16.gmra.mxu0 %v798
        %v1349 = vpop.f32.mrf.mxu0
        %v1350 = vadd.f32 %v1261, %v1349
        %v1351 = vpop.f32.mrf.mxu0
        %v1352 = vadd.f32 %v1263, %v1351
        %1353 = vdwg.mxu0
        %1354 = vmatpush.bf16.msra.mxu0 %v1006
        %1355 = vmatpush.bf16.msra.mxu0 %v1004
        %1356 = vmatpush.bf16.msra.mxu0 %v1002
        %1357 = vmatpush.bf16.msra.mxu0 %v1000
        %1358 = vmatpush.bf16.msra.mxu0 %v998
        %1359 = vmatpush.bf16.msra.mxu0 %v996
        %1360 = vmatpush.bf16.msra.mxu0 %v994
        %1361 = vmatpush.bf16.msra.mxu0 %v992
        %1362 = vmatmul.bf16.gmra.mxu0 %v751
        %v1363 = vpop.f32.mrf.mxu0
        %v1364 = vadd.f32 0.0, %v1363
        %v1365 = vpop.f32.mrf.mxu0
        %v1366 = vadd.f32 0.0, %v1365
        %1367 = vmatmul.bf16.gmra.mxu0 %v754
        %v1368 = vpop.f32.mrf.mxu0
        %v1369 = vadd.f32 0.0, %v1368
        %v1370 = vpop.f32.mrf.mxu0
        %v1371 = vadd.f32 0.0, %v1370
        %1372 = vmatmul.bf16.gmra.mxu0 %v757
        %v1373 = vpop.f32.mrf.mxu0
        %v1374 = vadd.f32 0.0, %v1373
        %v1375 = vpop.f32.mrf.mxu0
        %v1376 = vadd.f32 0.0, %v1375
        %1377 = vmatmul.bf16.gmra.mxu0 %v760
        %v1378 = vpop.f32.mrf.mxu0
        %v1379 = vadd.f32 0.0, %v1378
        %v1380 = vpop.f32.mrf.mxu0
        %v1381 = vadd.f32 0.0, %v1380
        %1382 = vmatmul.bf16.gmra.mxu0 %v763
        %v1383 = vpop.f32.mrf.mxu0
        %v1384 = vadd.f32 0.0, %v1383
        %v1385 = vpop.f32.mrf.mxu0
        %v1386 = vadd.f32 0.0, %v1385
        %1387 = vmatmul.bf16.gmra.mxu0 %v766
        %v1388 = vpop.f32.mrf.mxu0
        %v1389 = vadd.f32 0.0, %v1388
        %v1390 = vpop.f32.mrf.mxu0
        %v1391 = vadd.f32 0.0, %v1390
        %1392 = vmatmul.bf16.gmra.mxu0 %v769
        %v1393 = vpop.f32.mrf.mxu0
        %v1394 = vadd.f32 0.0, %v1393
        %v1395 = vpop.f32.mrf.mxu0
        %v1396 = vadd.f32 0.0, %v1395
        %1397 = vmatmul.bf16.gmra.mxu0 %v772
        %v1398 = vpop.f32.mrf.mxu0
        %v1399 = vadd.f32 0.0, %v1398
        %v1400 = vpop.f32.mrf.mxu0
        %v1401 = vadd.f32 0.0, %v1400
        %1402 = vmatmul.bf16.gmra.mxu0 %v775
        %v1403 = vpop.f32.mrf.mxu0
        %v1404 = vadd.f32 0.0, %v1403
        %v1405 = vpop.f32.mrf.mxu0
        %v1406 = vadd.f32 0.0, %v1405
        %1407 = vmatmul.bf16.gmra.mxu0 %v778
        %v1408 = vpop.f32.mrf.mxu0
        %v1409 = vadd.f32 0.0, %v1408
        %v1410 = vpop.f32.mrf.mxu0
        %v1411 = vadd.f32 0.0, %v1410
        %1412 = vmatmul.bf16.gmra.mxu0 %v781
        %v1413 = vpop.f32.mrf.mxu0
        %v1414 = vadd.f32 0.0, %v1413
        %v1415 = vpop.f32.mrf.mxu0
        %v1416 = vadd.f32 0.0, %v1415
        %1417 = vmatmul.bf16.gmra.mxu0 %v784
        %v1418 = vpop.f32.mrf.mxu0
        %v1419 = vadd.f32 0.0, %v1418
        %v1420 = vpop.f32.mrf.mxu0
        %v1421 = vadd.f32 0.0, %v1420
        %1422 = vmatmul.bf16.gmra.mxu0 %v787
        %v1423 = vpop.f32.mrf.mxu0
        %v1424 = vadd.f32 0.0, %v1423
        %v1425 = vpop.f32.mrf.mxu0
        %v1426 = vadd.f32 0.0, %v1425
        %1427 = vmatmul.bf16.gmra.mxu0 %v790
        %v1428 = vpop.f32.mrf.mxu0
        %v1429 = vadd.f32 0.0, %v1428
        %v1430 = vpop.f32.mrf.mxu0
        %v1431 = vadd.f32 0.0, %v1430
        %1432 = vmatmul.bf16.gmra.mxu0 %v793
        %v1433 = vpop.f32.mrf.mxu0
        %v1434 = vadd.f32 0.0, %v1433
        %v1435 = vpop.f32.mrf.mxu0
        %v1436 = vadd.f32 0.0, %v1435
        %1437 = vmatmul.bf16.gmra.mxu0 %v796
        %v1438 = vpop.f32.mrf.mxu0
        %v1439 = vadd.f32 0.0, %v1438
        %v1440 = vpop.f32.mrf.mxu0
        %v1441 = vadd.f32 0.0, %v1440
        %1442 = vdwg.mxu0
        %1443 = vmatpush.bf16.msra.mxu0 %v1022
        %1444 = vmatpush.bf16.msra.mxu0 %v1020
        %1445 = vmatpush.bf16.msra.mxu0 %v1018
        %1446 = vmatpush.bf16.msra.mxu0 %v1016
        %1447 = vmatpush.bf16.msra.mxu0 %v1014
        %1448 = vmatpush.bf16.msra.mxu0 %v1012
        %1449 = vmatpush.bf16.msra.mxu0 %v1010
        %1450 = vmatpush.bf16.msra.mxu0 %v1008
        %1451 = vmatmul.bf16.gmra.mxu0 %v752
        %v1452 = vpop.f32.mrf.mxu0
        %v1453 = vadd.f32 %v1364, %v1452
        %v1454 = vpop.f32.mrf.mxu0
        %v1455 = vadd.f32 %v1366, %v1454
        %1456 = vmatmul.bf16.gmra.mxu0 %v755
        %v1457 = vpop.f32.mrf.mxu0
        %v1458 = vadd.f32 %v1369, %v1457
        %v1459 = vpop.f32.mrf.mxu0
        %v1460 = vadd.f32 %v1371, %v1459
        %1461 = vmatmul.bf16.gmra.mxu0 %v758
        %v1462 = vpop.f32.mrf.mxu0
        %v1463 = vadd.f32 %v1374, %v1462
        %v1464 = vpop.f32.mrf.mxu0
        %v1465 = vadd.f32 %v1376, %v1464
        %1466 = vmatmul.bf16.gmra.mxu0 %v761
        %v1467 = vpop.f32.mrf.mxu0
        %v1468 = vadd.f32 %v1379, %v1467
        %v1469 = vpop.f32.mrf.mxu0
        %v1470 = vadd.f32 %v1381, %v1469
        %1471 = vmatmul.bf16.gmra.mxu0 %v764
        %v1472 = vpop.f32.mrf.mxu0
        %v1473 = vadd.f32 %v1384, %v1472
        %v1474 = vpop.f32.mrf.mxu0
        %v1475 = vadd.f32 %v1386, %v1474
        %1476 = vmatmul.bf16.gmra.mxu0 %v767
        %v1477 = vpop.f32.mrf.mxu0
        %v1478 = vadd.f32 %v1389, %v1477
        %v1479 = vpop.f32.mrf.mxu0
        %v1480 = vadd.f32 %v1391, %v1479
        %1481 = vmatmul.bf16.gmra.mxu0 %v770
        %v1482 = vpop.f32.mrf.mxu0
        %v1483 = vadd.f32 %v1394, %v1482
        %v1484 = vpop.f32.mrf.mxu0
        %v1485 = vadd.f32 %v1396, %v1484
        %1486 = vmatmul.bf16.gmra.mxu0 %v773
        %v1487 = vpop.f32.mrf.mxu0
        %v1488 = vadd.f32 %v1399, %v1487
        %v1489 = vpop.f32.mrf.mxu0
        %v1490 = vadd.f32 %v1401, %v1489
        %1491 = vmatmul.bf16.gmra.mxu0 %v776
        %v1492 = vpop.f32.mrf.mxu0
        %v1493 = vadd.f32 %v1404, %v1492
        %v1494 = vpop.f32.mrf.mxu0
        %v1495 = vadd.f32 %v1406, %v1494
        %1496 = vmatmul.bf16.gmra.mxu0 %v779
        %v1497 = vpop.f32.mrf.mxu0
        %v1498 = vadd.f32 %v1409, %v1497
        %v1499 = vpop.f32.mrf.mxu0
        %v1500 = vadd.f32 %v1411, %v1499
        %1501 = vmatmul.bf16.gmra.mxu0 %v782
        %v1502 = vpop.f32.mrf.mxu0
        %v1503 = vadd.f32 %v1414, %v1502
        %v1504 = vpop.f32.mrf.mxu0
        %v1505 = vadd.f32 %v1416, %v1504
        %1506 = vmatmul.bf16.gmra.mxu0 %v785
        %v1507 = vpop.f32.mrf.mxu0
        %v1508 = vadd.f32 %v1419, %v1507
        %v1509 = vpop.f32.mrf.mxu0
        %v1510 = vadd.f32 %v1421, %v1509
        %1511 = vmatmul.bf16.gmra.mxu0 %v788
        %v1512 = vpop.f32.mrf.mxu0
        %v1513 = vadd.f32 %v1424, %v1512
        %v1514 = vpop.f32.mrf.mxu0
        %v1515 = vadd.f32 %v1426, %v1514
        %1516 = vmatmul.bf16.gmra.mxu0 %v791
        %v1517 = vpop.f32.mrf.mxu0
        %v1518 = vadd.f32 %v1429, %v1517
        %v1519 = vpop.f32.mrf.mxu0
        %v1520 = vadd.f32 %v1431, %v1519
        %1521 = vmatmul.bf16.gmra.mxu0 %v794
        %v1522 = vpop.f32.mrf.mxu0
        %v1523 = vadd.f32 %v1434, %v1522
        %v1524 = vpop.f32.mrf.mxu0
        %v1525 = vadd.f32 %v1436, %v1524
        %1526 = vmatmul.bf16.gmra.mxu0 %v797
        %v1527 = vpop.f32.mrf.mxu0
        %v1528 = vadd.f32 %v1439, %v1527
        %v1529 = vpop.f32.mrf.mxu0
        %v1530 = vadd.f32 %v1441, %v1529
        %1531 = vdwg.mxu0
        %1532 = vmatpush.bf16.msra.mxu0 %v1038
        %1533 = vmatpush.bf16.msra.mxu0 %v1036
        %1534 = vmatpush.bf16.msra.mxu0 %v1034
        %1535 = vmatpush.bf16.msra.mxu0 %v1032
        %1536 = vmatpush.bf16.msra.mxu0 %v1030
        %1537 = vmatpush.bf16.msra.mxu0 %v1028
        %1538 = vmatpush.bf16.msra.mxu0 %v1026
        %1539 = vmatpush.bf16.msra.mxu0 %v1024
        %1540 = vmatmul.bf16.gmra.mxu0 %v753
        %v1541 = vpop.f32.mrf.mxu0
        %v1542 = vadd.f32 %v1453, %v1541
        %v1543 = vpop.f32.mrf.mxu0
        %v1544 = vadd.f32 %v1455, %v1543
        %1545 = vmatmul.bf16.gmra.mxu0 %v756
        %v1546 = vpop.f32.mrf.mxu0
        %v1547 = vadd.f32 %v1458, %v1546
        %v1548 = vpop.f32.mrf.mxu0
        %v1549 = vadd.f32 %v1460, %v1548
        %1550 = vmatmul.bf16.gmra.mxu0 %v759
        %v1551 = vpop.f32.mrf.mxu0
        %v1552 = vadd.f32 %v1463, %v1551
        %v1553 = vpop.f32.mrf.mxu0
        %v1554 = vadd.f32 %v1465, %v1553
        %1555 = vmatmul.bf16.gmra.mxu0 %v762
        %v1556 = vpop.f32.mrf.mxu0
        %v1557 = vadd.f32 %v1468, %v1556
        %v1558 = vpop.f32.mrf.mxu0
        %v1559 = vadd.f32 %v1470, %v1558
        %1560 = vmatmul.bf16.gmra.mxu0 %v765
        %v1561 = vpop.f32.mrf.mxu0
        %v1562 = vadd.f32 %v1473, %v1561
        %v1563 = vpop.f32.mrf.mxu0
        %v1564 = vadd.f32 %v1475, %v1563
        %1565 = vmatmul.bf16.gmra.mxu0 %v768
        %v1566 = vpop.f32.mrf.mxu0
        %v1567 = vadd.f32 %v1478, %v1566
        %v1568 = vpop.f32.mrf.mxu0
        %v1569 = vadd.f32 %v1480, %v1568
        %1570 = vmatmul.bf16.gmra.mxu0 %v771
        %v1571 = vpop.f32.mrf.mxu0
        %v1572 = vadd.f32 %v1483, %v1571
        %v1573 = vpop.f32.mrf.mxu0
        %v1574 = vadd.f32 %v1485, %v1573
        %1575 = vmatmul.bf16.gmra.mxu0 %v774
        %v1576 = vpop.f32.mrf.mxu0
        %v1577 = vadd.f32 %v1488, %v1576
        %v1578 = vpop.f32.mrf.mxu0
        %v1579 = vadd.f32 %v1490, %v1578
        %1580 = vmatmul.bf16.gmra.mxu0 %v777
        %v1581 = vpop.f32.mrf.mxu0
        %v1582 = vadd.f32 %v1493, %v1581
        %v1583 = vpop.f32.mrf.mxu0
        %v1584 = vadd.f32 %v1495, %v1583
        %1585 = vmatmul.bf16.gmra.mxu0 %v780
        %v1586 = vpop.f32.mrf.mxu0
        %v1587 = vadd.f32 %v1498, %v1586
        %v1588 = vpop.f32.mrf.mxu0
        %v1589 = vadd.f32 %v1500, %v1588
        %1590 = vmatmul.bf16.gmra.mxu0 %v783
        %v1591 = vpop.f32.mrf.mxu0
        %v1592 = vadd.f32 %v1503, %v1591
        %v1593 = vpop.f32.mrf.mxu0
        %v1594 = vadd.f32 %v1505, %v1593
        %1595 = vmatmul.bf16.gmra.mxu0 %v786
        %v1596 = vpop.f32.mrf.mxu0
        %v1597 = vadd.f32 %v1508, %v1596
        %v1598 = vpop.f32.mrf.mxu0
        %v1599 = vadd.f32 %v1510, %v1598
        %1600 = vmatmul.bf16.gmra.mxu0 %v789
        %v1601 = vpop.f32.mrf.mxu0
        %v1602 = vadd.f32 %v1513, %v1601
        %v1603 = vpop.f32.mrf.mxu0
        %v1604 = vadd.f32 %v1515, %v1603
        %1605 = vmatmul.bf16.gmra.mxu0 %v792
        %v1606 = vpop.f32.mrf.mxu0
        %v1607 = vadd.f32 %v1518, %v1606
        %v1608 = vpop.f32.mrf.mxu0
        %v1609 = vadd.f32 %v1520, %v1608
        %1610 = vmatmul.bf16.gmra.mxu0 %v795
        %v1611 = vpop.f32.mrf.mxu0
        %v1612 = vadd.f32 %v1523, %v1611
        %v1613 = vpop.f32.mrf.mxu0
        %v1614 = vadd.f32 %v1525, %v1613
        %1615 = vmatmul.bf16.gmra.mxu0 %v798
        %v1616 = vpop.f32.mrf.mxu0
        %v1617 = vadd.f32 %v1528, %v1616
        %v1618 = vpop.f32.mrf.mxu0
        %v1619 = vadd.f32 %v1530, %v1618
        %1620 = vdwg.mxu0
        %v1621 = vadd.f32 %v415, %v1275
        %v1622 = vadd.f32 %v416, %v1542
        %v1623 = vadd.f32 %v417, %v1277
        %v1624 = vadd.f32 %v418, %v1544
        %v1625 = vadd.f32 %v419, %v1280
        %v1626 = vadd.f32 %v420, %v1547
        %v1627 = vadd.f32 %v421, %v1282
        %v1628 = vadd.f32 %v422, %v1549
        %v1629 = vadd.f32 %v423, %v1285
        %v1630 = vadd.f32 %v424, %v1552
        %v1631 = vadd.f32 %v425, %v1287
        %v1632 = vadd.f32 %v426, %v1554
        %v1633 = vadd.f32 %v427, %v1290
        %v1634 = vadd.f32 %v428, %v1557
        %v1635 = vadd.f32 %v429, %v1292
        %v1636 = vadd.f32 %v430, %v1559
        %v1637 = vadd.f32 %v431, %v1295
        %v1638 = vadd.f32 %v432, %v1562
        %v1639 = vadd.f32 %v433, %v1297
        %v1640 = vadd.f32 %v434, %v1564
        %v1641 = vadd.f32 %v435, %v1300
        %v1642 = vadd.f32 %v436, %v1567
        %v1643 = vadd.f32 %v437, %v1302
        %v1644 = vadd.f32 %v438, %v1569
        %v1645 = vadd.f32 %v439, %v1305
        %v1646 = vadd.f32 %v440, %v1572
        %v1647 = vadd.f32 %v441, %v1307
        %v1648 = vadd.f32 %v442, %v1574
        %v1649 = vadd.f32 %v443, %v1310
        %v1650 = vadd.f32 %v444, %v1577
        %v1651 = vadd.f32 %v445, %v1312
        %v1652 = vadd.f32 %v446, %v1579
        %v1653 = vadd.f32 %v447, %v1315
        %v1654 = vadd.f32 %v448, %v1582
        %v1655 = vadd.f32 %v449, %v1317
        %v1656 = vadd.f32 %v450, %v1584
        %v1657 = vadd.f32 %v451, %v1320
        %v1658 = vadd.f32 %v452, %v1587
        %v1659 = vadd.f32 %v453, %v1322
        %v1660 = vadd.f32 %v454, %v1589
        %v1661 = vadd.f32 %v455, %v1325
        %v1662 = vadd.f32 %v456, %v1592
        %v1663 = vadd.f32 %v457, %v1327
        %v1664 = vadd.f32 %v458, %v1594
        %v1665 = vadd.f32 %v459, %v1330
        %v1666 = vadd.f32 %v460, %v1597
        %v1667 = vadd.f32 %v461, %v1332
        %v1668 = vadd.f32 %v462, %v1599
        %v1669 = vadd.f32 %v463, %v1335
        %v1670 = vadd.f32 %v464, %v1602
        %v1671 = vadd.f32 %v465, %v1337
        %v1672 = vadd.f32 %v466, %v1604
        %v1673 = vadd.f32 %v467, %v1340
        %v1674 = vadd.f32 %v468, %v1607
        %v1675 = vadd.f32 %v469, %v1342
        %v1676 = vadd.f32 %v470, %v1609
        %v1677 = vadd.f32 %v471, %v1345
        %v1678 = vadd.f32 %v472, %v1612
        %v1679 = vadd.f32 %v473, %v1347
        %v1680 = vadd.f32 %v474, %v1614
        %v1681 = vadd.f32 %v475, %v1350
        %v1682 = vadd.f32 %v476, %v1617
        %v1683 = vadd.f32 %v477, %v1352
        %v1684 = vadd.f32 %v478, %v1619
        %1685 = vst [vmem:[%s345] sm:$0xff] %v1621
        %1686 = vst [vmem:[%s345 + $0x8] sm:$0xff] %v1622
        %1687 = vst [vmem:[%s345 + $0x10] sm:$0xff] %v1623
        %1688 = vst [vmem:[%s345 + $0x18] sm:$0xff] %v1624
        %1689 = vst [vmem:[%s345 + $0x20] sm:$0xff] %v1625
        %1690 = vst [vmem:[%s345 + $0x28] sm:$0xff] %v1626
        %1691 = vst [vmem:[%s345 + $0x30] sm:$0xff] %v1627
        %1692 = vst [vmem:[%s345 + $0x38] sm:$0xff] %v1628
        %1693 = vst [vmem:[%s345 + $0x40] sm:$0xff] %v1629
        %1694 = vst [vmem:[%s345 + $0x48] sm:$0xff] %v1630
        %1695 = vst [vmem:[%s345 + $0x50] sm:$0xff] %v1631
        %1696 = vst [vmem:[%s345 + $0x58] sm:$0xff] %v1632
        %1697 = vst [vmem:[%s345 + $0x60] sm:$0xff] %v1633
        %1698 = vst [vmem:[%s345 + $0x68] sm:$0xff] %v1634
        %1699 = vst [vmem:[%s345 + $0x70] sm:$0xff] %v1635
        %1700 = vst [vmem:[%s345 + $0x78] sm:$0xff] %v1636
        %1701 = vst [vmem:[%s345 + $0x80] sm:$0xff] %v1637
        %1702 = vst [vmem:[%s345 + $0x88] sm:$0xff] %v1638
        %1703 = vst [vmem:[%s345 + $0x90] sm:$0xff] %v1639
        %1704 = vst [vmem:[%s345 + $0x98] sm:$0xff] %v1640
        %1705 = vst [vmem:[%s345 + $0xa0] sm:$0xff] %v1641
        %1706 = vst [vmem:[%s345 + $0xa8] sm:$0xff] %v1642
        %1707 = vst [vmem:[%s345 + $0xb0] sm:$0xff] %v1643
        %1708 = vst [vmem:[%s345 + $0xb8] sm:$0xff] %v1644
        %1709 = vst [vmem:[%s345 + $0xc0] sm:$0xff] %v1645
        %1710 = vst [vmem:[%s345 + $0xc8] sm:$0xff] %v1646
        %1711 = vst [vmem:[%s345 + $0xd0] sm:$0xff] %v1647
        %1712 = vst [vmem:[%s345 + $0xd8] sm:$0xff] %v1648
        %1713 = vst [vmem:[%s345 + $0xe0] sm:$0xff] %v1649
        %1714 = vst [vmem:[%s345 + $0xe8] sm:$0xff] %v1650
        %1715 = vst [vmem:[%s345 + $0xf0] sm:$0xff] %v1651
        %1716 = vst [vmem:[%s345 + $0xf8] sm:$0xff] %v1652
        %1717 = vst [vmem:[%s345 + $0x100] sm:$0xff] %v1653
        %1718 = vst [vmem:[%s345 + $0x108] sm:$0xff] %v1654
        %1719 = vst [vmem:[%s345 + $0x110] sm:$0xff] %v1655
        %1720 = vst [vmem:[%s345 + $0x118] sm:$0xff] %v1656
        %1721 = vst [vmem:[%s345 + $0x120] sm:$0xff] %v1657
        %1722 = vst [vmem:[%s345 + $0x128] sm:$0xff] %v1658
        %1723 = vst [vmem:[%s345 + $0x130] sm:$0xff] %v1659
        %1724 = vst [vmem:[%s345 + $0x138] sm:$0xff] %v1660
        %1725 = vst [vmem:[%s345 + $0x140] sm:$0xff] %v1661
        %1726 = vst [vmem:[%s345 + $0x148] sm:$0xff] %v1662
        %1727 = vst [vmem:[%s345 + $0x150] sm:$0xff] %v1663
        %1728 = vst [vmem:[%s345 + $0x158] sm:$0xff] %v1664
        %1729 = vst [vmem:[%s345 + $0x160] sm:$0xff] %v1665
        %1730 = vst [vmem:[%s345 + $0x168] sm:$0xff] %v1666
        %1731 = vst [vmem:[%s345 + $0x170] sm:$0xff] %v1667
        %1732 = vst [vmem:[%s345 + $0x178] sm:$0xff] %v1668
        %1733 = vst [vmem:[%s345 + $0x180] sm:$0xff] %v1669
        %1734 = vst [vmem:[%s345 + $0x188] sm:$0xff] %v1670
        %1735 = vst [vmem:[%s345 + $0x190] sm:$0xff] %v1671
        %1736 = vst [vmem:[%s345 + $0x198] sm:$0xff] %v1672
        %1737 = vst [vmem:[%s345 + $0x1a0] sm:$0xff] %v1673
        %1738 = vst [vmem:[%s345 + $0x1a8] sm:$0xff] %v1674
        %1739 = vst [vmem:[%s345 + $0x1b0] sm:$0xff] %v1675
        %1740 = vst [vmem:[%s345 + $0x1b8] sm:$0xff] %v1676
        %1741 = vst [vmem:[%s345 + $0x1c0] sm:$0xff] %v1677
        %1742 = vst [vmem:[%s345 + $0x1c8] sm:$0xff] %v1678
        %1743 = vst [vmem:[%s345 + $0x1d0] sm:$0xff] %v1679
        %1744 = vst [vmem:[%s345 + $0x1d8] sm:$0xff] %v1680
        %1745 = vst [vmem:[%s345 + $0x1e0] sm:$0xff] %v1681
        %1746 = vst [vmem:[%s345 + $0x1e8] sm:$0xff] %v1682
        %1747 = vst [vmem:[%s345 + $0x1f0] sm:$0xff] %v1683
        %1748 = vst [vmem:[%s345 + $0x1f8] sm:$0xff] %v1684
        %s1749 = smul.u32 32, %s17
        %p1750 = scmp.lt.s32.totalorder %s1749, 63
        %s1751 = scalar_select %p1750, %s1749, 63
        %s1752 = smul.addr %s1751, 2
        %s1753 = smul.addr %s1752, 8
        %s1754 = scalar_lea.vmem %s2, %s1753
        // Predicated region
        $region59: #{scale_prediction_forward.2} parent=49 // pred_check
          %p1755 = pneg %p97
        $region60: #{scale_prediction_forward.2} parent=49 // pred_check_branch
          %1757 = sbr.rel (%p1755) target = $region62
        $region61: #{scale_prediction_forward.2} parent=49 // pred_region
          %s1758 = smul.u32 32, %s17
        $region62: #{scale_prediction_forward.2} parent=49 // pred_fallthru
          _
      $region50: #{scale_prediction_forward.2} parent=5 // pred_fallthru
        _
      %p1759 = scmp.le.s32.totalorder 2, %s8
      // Predicated region
      $region63: #{scale_prediction_forward.2} parent=5 // pred_check
        %p1760 = pneg %p1759
      $region64: #{scale_prediction_forward.2} parent=5 // pred_check_branch
        %1762 = sbr.rel (%p1760) target = $region66
      $region65: #{scale_prediction_forward.2} parent=5 // pred_region
        %s1763 = ssub.s32 %s8, 2
        // Predicated region
        $region67: #{scale_prediction_forward.2} parent=65 // pred_check
          %p1764 = pneg %p103
        $region68: #{scale_prediction_forward.2} parent=65 // pred_check_branch
          %1766 = sbr.rel (%p1764) target = $region70
        $region69: #{scale_prediction_forward.2} parent=65 // pred_region
          %s1767 = smul.u32 32, %s19
          %p1768 = scmp.lt.s32.totalorder %s1767, 63
          %s1769 = scalar_select %p1768, %s1767, 63
          %s1770 = smul.addr %s1769, 2
          %s1771 = smul.addr %s1770, 8
          %s1772 = scalar_lea.vmem %s2, %s1771
        $region70: #{scale_prediction_forward.2} parent=65 // pred_fallthru
          _
      $region66: #{scale_prediction_forward.2} parent=5 // pred_fallthru
        _
    $region6: #{scale_prediction_forward.2} parent=1 // loop_footer
      %s12 = sadd.s32 1, %s8
    $region7: #{scale_prediction_forward.2} parent=1 // loop_footer_branch
      %7 = sbr.rel target = $region3
    $region8: #{scale_prediction_forward.2} parent=1 // loop_exit
      _

// kernel: scale_prediction_forward.3
$region0: #{scale_prediction_forward.3}
  #allocation0 [shape = 'u32[]', space=smem, size = 0x4, offset = 0x4, fixed_abs, tag = 'smem constant byte address 0x4 - core index']
  #allocation1 [shape = 'u32[72,128]{1,0:T(1,128)}', space=vmem, size = 0x9000, scoped, tag = 'internal scratch']
  %s0 = inlined_call_operand.vmem [shape: f32[512,256], index: 0, kind: input, shape index: {}]
  %s1 = inlined_call_operand.vmem [shape: f32[1,256], index: 1, kind: input, shape index: {}]
  %s2 = inlined_call_operand.vmem [shape: f32[1,256], index: 2, kind: input, shape index: {}]
  %s3 = inlined_call_operand.vmem [shape: bf16[256,128], index: 3, kind: input, shape index: {}]
  %s4 = inlined_call_operand.vmem [shape: f32[1,128], index: 4, kind: input, shape index: {}]
  %s5 = inlined_call_operand.vmem [shape: f32[512,128], index: 5, kind: output, shape index: {}]
  %s6 = sld [smem:[#allocation0]]
  $region53: #{scale_prediction_forward.3} parent=0
    _
  %s8 = ssub.s32 1, %s6
  %s9 = scalar_select 0, %s8, %s6
  loop: start=0, step=1, limit=4
  $region2: #{scale_prediction_forward.3} parent=0 // loop_pre_header
    _
  $region3: #{scale_prediction_forward.3} parent=0 // loop_header
    %s11 = sphi 0, %s15
    %p12 = scmp.ge.s32.totalorder %s11, 4
    %s21 = sphi 0, %s23
    %s24 = sphi 0, %s21
    %s25 = sphi 0, %s24
    %s41 = sphi 0, %s25
    %s45 = sphi 0, %s45
    %s47 = sphi 0, %s45
    %s48 = sphi 0, %s47
    %s62 = sphi 0, %s48
    %s66 = sphi 0, %s66
    %s68 = sphi 0, %s66
    %s69 = sphi 0, %s68
    %s83 = sphi 0, %s69
    %s87 = sphi 0, %s87
    %s89 = sphi 0, %s87
    %s90 = sphi 0, %s89
    %s104 = sphi 0, %s90
    %s108 = sphi 0, %s108
    %s110 = sphi 0, %s108
    %s111 = sphi 0, %s110
    %s125 = sphi 0, %s111
    %s131 = sphi 0, %s133
    %s134 = sphi 0, %s131
    %s135 = sphi 0, %s134
    %s151 = sphi 0, %s135
  $region4: #{scale_prediction_forward.3} parent=0 // loop_header_branch
    %14 = sbr.rel (%p12) target = $region8
  $region5: #{scale_prediction_forward.3} parent=0 // loop_body
    %s16 = ssub.s32 %s11, 1
    %s17 = ssub.s32 %s11, 2
    %s18 = sadd.s32 %s11, 1
    %s19 = ssub.s32 %s11, %s18
    %p20 = scmp.eq.s32.totalorder %s19, 0
    %s22 = sadd.s32 %s21, 1
    %s23 = scalar_select %p20, %s21, %s22
    %p26 = pneg %p20
    %p27 = scmp.eq.s32.totalorder %s11, 1
    %p28 = por %p26, %p27
    %p29 = scmp.ne.s32.totalorder %s21, %s24
    %p30 = scmp.eq.s32.totalorder %s11, 0
    %p31 = por %p29, %p30
    %p32 = scmp.ne.s32.totalorder %s21, %s24
    %p33 = scmp.eq.s32.totalorder %s16, 1
    %p34 = por %p32, %p33
    %p35 = scmp.ne.s32.totalorder %s24, %s25
    %p36 = scmp.eq.s32.totalorder %s16, 0
    %p37 = por %p35, %p36
    %p38 = scmp.ne.s32.totalorder %s24, %s25
    %p39 = scmp.eq.s32.totalorder %s17, 1
    %p40 = por %p38, %p39
    %p42 = scmp.ne.s32.totalorder %s25, %s41
    %p43 = scmp.eq.s32.totalorder %s17, 0
    %p44 = por %p42, %p43
    %s46 = sadd.s32 %s45, 1
    %p49 = scmp.eq.s32.totalorder %s11, 1
    %p50 = scmp.ne.s32.totalorder %s45, %s47
    %p51 = scmp.eq.s32.totalorder %s11, 0
    %p52 = por %p50, %p51
    %p53 = scmp.ne.s32.totalorder %s45, %s47
    %p54 = scmp.eq.s32.totalorder %s16, 1
    %p55 = por %p53, %p54
    %p56 = scmp.ne.s32.totalorder %s47, %s48
    %p57 = scmp.eq.s32.totalorder %s16, 0
    %p58 = por %p56, %p57
    %p59 = scmp.ne.s32.totalorder %s47, %s48
    %p60 = scmp.eq.s32.totalorder %s17, 1
    %p61 = por %p59, %p60
    %p63 = scmp.ne.s32.totalorder %s48, %s62
    %p64 = scmp.eq.s32.totalorder %s17, 0
    %p65 = por %p63, %p64
    %s67 = sadd.s32 %s66, 1
    %p70 = scmp.eq.s32.totalorder %s11, 1
    %p71 = scmp.ne.s32.totalorder %s66, %s68
    %p72 = scmp.eq.s32.totalorder %s11, 0
    %p73 = por %p71, %p72
    %p74 = scmp.ne.s32.totalorder %s66, %s68
    %p75 = scmp.eq.s32.totalorder %s16, 1
    %p76 = por %p74, %p75
    %p77 = scmp.ne.s32.totalorder %s68, %s69
    %p78 = scmp.eq.s32.totalorder %s16, 0
    %p79 = por %p77, %p78
    %p80 = scmp.ne.s32.totalorder %s68, %s69
    %p81 = scmp.eq.s32.totalorder %s17, 1
    %p82 = por %p80, %p81
    %p84 = scmp.ne.s32.totalorder %s69, %s83
    %p85 = scmp.eq.s32.totalorder %s17, 0
    %p86 = por %p84, %p85
    %s88 = sadd.s32 %s87, 1
    %p91 = scmp.eq.s32.totalorder %s11, 1
    %p92 = scmp.ne.s32.totalorder %s87, %s89
    %p93 = scmp.eq.s32.totalorder %s11, 0
    %p94 = por %p92, %p93
    %p95 = scmp.ne.s32.totalorder %s87, %s89
    %p96 = scmp.eq.s32.totalorder %s16, 1
    %p97 = por %p95, %p96
    %p98 = scmp.ne.s32.totalorder %s89, %s90
    %p99 = scmp.eq.s32.totalorder %s16, 0
    %p100 = por %p98, %p99
    %p101 = scmp.ne.s32.totalorder %s89, %s90
    %p102 = scmp.eq.s32.totalorder %s17, 1
    %p103 = por %p101, %p102
    %p105 = scmp.ne.s32.totalorder %s90, %s104
    %p106 = scmp.eq.s32.totalorder %s17, 0
    %p107 = por %p105, %p106
    %s109 = sadd.s32 %s108, 1
    %p112 = scmp.eq.s32.totalorder %s11, 1
    %p113 = scmp.ne.s32.totalorder %s108, %s110
    %p114 = scmp.eq.s32.totalorder %s11, 0
    %p115 = por %p113, %p114
    %p116 = scmp.ne.s32.totalorder %s108, %s110
    %p117 = scmp.eq.s32.totalorder %s16, 1
    %p118 = por %p116, %p117
    %p119 = scmp.ne.s32.totalorder %s110, %s111
    %p120 = scmp.eq.s32.totalorder %s16, 0
    %p121 = por %p119, %p120
    %p122 = scmp.ne.s32.totalorder %s110, %s111
    %p123 = scmp.eq.s32.totalorder %s17, 1
    %p124 = por %p122, %p123
    %p126 = scmp.ne.s32.totalorder %s111, %s125
    %p127 = scmp.eq.s32.totalorder %s17, 0
    %p128 = por %p126, %p127
    %s129 = ssub.s32 %s11, %s18
    %p130 = scmp.eq.s32.totalorder %s129, 0
    %s132 = sadd.s32 %s131, 1
    %s133 = scalar_select %p130, %s131, %s132
    %p136 = pneg %p130
    %p137 = scmp.eq.s32.totalorder %s11, 1
    %p138 = por %p136, %p137
    %p139 = scmp.ne.s32.totalorder %s131, %s134
    %p140 = scmp.eq.s32.totalorder %s11, 0
    %p141 = por %p139, %p140
    %p142 = scmp.ne.s32.totalorder %s131, %s134
    %p143 = scmp.eq.s32.totalorder %s16, 1
    %p144 = por %p142, %p143
    %p145 = scmp.ne.s32.totalorder %s134, %s135
    %p146 = scmp.eq.s32.totalorder %s16, 0
    %p147 = por %p145, %p146
    %p148 = scmp.ne.s32.totalorder %s134, %s135
    %p149 = scmp.eq.s32.totalorder %s17, 1
    %p150 = por %p148, %p149
    %p152 = scmp.ne.s32.totalorder %s135, %s151
    %p153 = scmp.eq.s32.totalorder %s17, 0
    %p154 = por %p152, %p153
    %p155 = scmp.le.s32.totalorder 1, %s11
    %p156 = scmp.lt.s32.totalorder %s11, 3
    %p157 = pnand %p155, %p156
    %p158 = pneg %p157
    // Predicated region
    $region9: #{scale_prediction_forward.3} parent=5 // pred_check
      _
    $region10: #{scale_prediction_forward.3} parent=5 // pred_check_branch
      %160 = sbr.rel (%p157) target = $region12
    $region11: #{scale_prediction_forward.3} parent=5 // pred_region
      %s161 = ssub.s32 %s11, 1
      // Predicated region
      $region13: #{scale_prediction_forward.3} parent=11 // pred_check
        %p162 = pneg %p58
      $region14: #{scale_prediction_forward.3} parent=11 // pred_check_branch
        %164 = sbr.rel (%p162) target = $region16
      $region15: #{scale_prediction_forward.3} parent=11 // pred_region
        _
      $region16: #{scale_prediction_forward.3} parent=11 // pred_fallthru
        _
      // Predicated region
      $region17: #{scale_prediction_forward.3} parent=11 // pred_check
        %p165 = pneg %p79
      $region18: #{scale_prediction_forward.3} parent=11 // pred_check_branch
        %167 = sbr.rel (%p165) target = $region20
      $region19: #{scale_prediction_forward.3} parent=11 // pred_region
        _
      $region20: #{scale_prediction_forward.3} parent=11 // pred_fallthru
        _
      // Predicated region
      $region21: #{scale_prediction_forward.3} parent=11 // pred_check
        %p168 = pneg %p100
      $region22: #{scale_prediction_forward.3} parent=11 // pred_check_branch
        %170 = sbr.rel (%p168) target = $region24
      $region23: #{scale_prediction_forward.3} parent=11 // pred_region
        _
      $region24: #{scale_prediction_forward.3} parent=11 // pred_fallthru
        _
      // Predicated region
      $region25: #{scale_prediction_forward.3} parent=11 // pred_check
        %p171 = pneg %p121
      $region26: #{scale_prediction_forward.3} parent=11 // pred_check_branch
        %173 = sbr.rel (%p171) target = $region28
      $region27: #{scale_prediction_forward.3} parent=11 // pred_region
        _
      $region28: #{scale_prediction_forward.3} parent=11 // pred_fallthru
        _
    $region12: #{scale_prediction_forward.3} parent=5 // pred_fallthru
      _
    %p174 = scmp.lt.s32.totalorder %s11, 2
    // Predicated region
    $region29: #{scale_prediction_forward.3} parent=5 // pred_check
      %p175 = pneg %p174
    $region30: #{scale_prediction_forward.3} parent=5 // pred_check_branch
      %177 = sbr.rel (%p175) target = $region32
    $region31: #{scale_prediction_forward.3} parent=5 // pred_region
      // Predicated region
      $region33: #{scale_prediction_forward.3} parent=31 // pred_check
        %p178 = pneg %p31
      $region34: #{scale_prediction_forward.3} parent=31 // pred_check_branch
        %180 = sbr.rel (%p178) target = $region36
      $region35: #{scale_prediction_forward.3} parent=31 // pred_region
        %s181 = smul.u32 32, %s11
        %p182 = scmp.lt.s32.totalorder %s181, 63
        %s183 = scalar_select %p182, %s181, 63
        %s184 = smul.addr %s183, 2
        %s185 = smul.addr %s184, 8
        %s186 = scalar_lea.vmem %s0, %s185
        %s187 = smul.u32 32, %s11
      $region36: #{scale_prediction_forward.3} parent=31 // pred_fallthru
        _
    $region32: #{scale_prediction_forward.3} parent=5 // pred_fallthru
      _
    %p188 = scmp.le.s32.totalorder 1, %s11
    %p189 = scmp.lt.s32.totalorder %s11, 3
    %p190 = pnand %p188, %p189
    %p191 = pneg %p190
    // Predicated region
    $region37: #{scale_prediction_forward.3} parent=5 // pred_check
      _
    $region38: #{scale_prediction_forward.3} parent=5 // pred_check_branch
      %193 = sbr.rel (%p190) target = $region40
    $region39: #{scale_prediction_forward.3} parent=5 // pred_region
      %s194 = ssub.s32 %s11, 1
      %s195 = smul.u32 32, %s16
      %p196 = scmp.lt.s32.totalorder %s195, 63
      %s197 = scalar_select %p196, %s195, 63
      %s198 = smul.addr %s197, 2
      %s199 = smul.addr %s198, 8
      %s200 = scalar_lea.vmem %s0, %s199
      %p201 = pneg %p37
      %p202 = pneg %p34
      %p203 = pneg %p58
      %p204 = pneg %p55
      %p205 = pneg %p79
      %p206 = pneg %p76
      %p207 = pneg %p100
      %p208 = pneg %p97
      %p209 = pneg %p121
      %p210 = pneg %p118
      %p211 = pneg %p147
      %p212 = pneg %p144
      %s213 = smul.u32 32, %s16
      %p214 = scmp.lt.s32.totalorder %s213, 63
      %s215 = scalar_select %p214, %s213, 63
      %s216 = smul.addr %s215, 8
      %s217 = scalar_lea.vmem %s5, %s216
      %s218 = smul.u32 32, %s16
      %p219 = scmp.lt.s32.totalorder %s218, 63
      %s220 = scalar_select %p219, %s218, 63
      %s221 = smul.addr %s220, 2
      %s222 = smul.addr %s221, 8
      %s223 = scalar_lea.vmem %s0, %s222
      %s224 = smul.u32 32, %s16
      %s225 = smul.u32 32, %s16
      %p226 = scmp.lt.s32.totalorder %s225, 63
      %s227 = scalar_select %p226, %s225, 63
      %s228 = smul.addr %s227, 8
      %s229 = scalar_lea.vmem %s5, %s228
      %s230 = smul.u32 32, %s16
      %v231 = vld [vmem:[%s223] sm:$0xff]
      %v232 = vld [vmem:[%s223 + $0x8] sm:$0xff]
      %v233 = vld [vmem:[%s223 + $0x10] sm:$0xff]
      %v234 = vld [vmem:[%s223 + $0x18] sm:$0xff]
      %v235 = vld [vmem:[%s223 + $0x20] sm:$0xff]
      %v236 = vld [vmem:[%s223 + $0x28] sm:$0xff]
      %v237 = vld [vmem:[%s223 + $0x30] sm:$0xff]
      %v238 = vld [vmem:[%s223 + $0x38] sm:$0xff]
      %v239 = vld [vmem:[%s223 + $0x40] sm:$0xff]
      %v240 = vld [vmem:[%s223 + $0x48] sm:$0xff]
      %v241 = vld [vmem:[%s223 + $0x50] sm:$0xff]
      %v242 = vld [vmem:[%s223 + $0x58] sm:$0xff]
      %v243 = vld [vmem:[%s223 + $0x60] sm:$0xff]
      %v244 = vld [vmem:[%s223 + $0x68] sm:$0xff]
      %v245 = vld [vmem:[%s223 + $0x70] sm:$0xff]
      %v246 = vld [vmem:[%s223 + $0x78] sm:$0xff]
      %v247 = vld [vmem:[%s223 + $0x80] sm:$0xff]
      %v248 = vld [vmem:[%s223 + $0x88] sm:$0xff]
      %v249 = vld [vmem:[%s223 + $0x90] sm:$0xff]
      %v250 = vld [vmem:[%s223 + $0x98] sm:$0xff]
      %v251 = vld [vmem:[%s223 + $0xa0] sm:$0xff]
      %v252 = vld [vmem:[%s223 + $0xa8] sm:$0xff]
      %v253 = vld [vmem:[%s223 + $0xb0] sm:$0xff]
      %v254 = vld [vmem:[%s223 + $0xb8] sm:$0xff]
      %v255 = vld [vmem:[%s223 + $0xc0] sm:$0xff]
      %v256 = vld [vmem:[%s223 + $0xc8] sm:$0xff]
      %v257 = vld [vmem:[%s223 + $0xd0] sm:$0xff]
      %v258 = vld [vmem:[%s223 + $0xd8] sm:$0xff]
      %v259 = vld [vmem:[%s223 + $0xe0] sm:$0xff]
      %v260 = vld [vmem:[%s223 + $0xe8] sm:$0xff]
      %v261 = vld [vmem:[%s223 + $0xf0] sm:$0xff]
      %v262 = vld [vmem:[%s223 + $0xf8] sm:$0xff]
      %v263 = vld [vmem:[%s223 + $0x100] sm:$0xff]
      %v264 = vld [vmem:[%s223 + $0x108] sm:$0xff]
      %v265 = vld [vmem:[%s223 + $0x110] sm:$0xff]
      %v266 = vld [vmem:[%s223 + $0x118] sm:$0xff]
      %v267 = vld [vmem:[%s223 + $0x120] sm:$0xff]
      %v268 = vld [vmem:[%s223 + $0x128] sm:$0xff]
      %v269 = vld [vmem:[%s223 + $0x130] sm:$0xff]
      %v270 = vld [vmem:[%s223 + $0x138] sm:$0xff]
      %v271 = vld [vmem:[%s223 + $0x140] sm:$0xff]
      %v272 = vld [vmem:[%s223 + $0x148] sm:$0xff]
      %v273 = vld [vmem:[%s223 + $0x150] sm:$0xff]
      %v274 = vld [vmem:[%s223 + $0x158] sm:$0xff]
      %v275 = vld [vmem:[%s223 + $0x160] sm:$0xff]
      %v276 = vld [vmem:[%s223 + $0x168] sm:$0xff]
      %v277 = vld [vmem:[%s223 + $0x170] sm:$0xff]
      %v278 = vld [vmem:[%s223 + $0x178] sm:$0xff]
      %v279 = vld [vmem:[%s223 + $0x180] sm:$0xff]
      %v280 = vld [vmem:[%s223 + $0x188] sm:$0xff]
      %v281 = vld [vmem:[%s223 + $0x190] sm:$0xff]
      %v282 = vld [vmem:[%s223 + $0x198] sm:$0xff]
      %v283 = vld [vmem:[%s223 + $0x1a0] sm:$0xff]
      %v284 = vld [vmem:[%s223 + $0x1a8] sm:$0xff]
      %v285 = vld [vmem:[%s223 + $0x1b0] sm:$0xff]
      %v286 = vld [vmem:[%s223 + $0x1b8] sm:$0xff]
      %v287 = vld [vmem:[%s223 + $0x1c0] sm:$0xff]
      %v288 = vld [vmem:[%s223 + $0x1c8] sm:$0xff]
      %v289 = vld [vmem:[%s223 + $0x1d0] sm:$0xff]
      %v290 = vld [vmem:[%s223 + $0x1d8] sm:$0xff]
      %v291 = vld [vmem:[%s223 + $0x1e0] sm:$0xff]
      %v292 = vld [vmem:[%s223 + $0x1e8] sm:$0xff]
      %v293 = vld [vmem:[%s223 + $0x1f0] sm:$0xff]
      %v294 = vld [vmem:[%s223 + $0x1f8] sm:$0xff]
      %v295 = vld [vmem:[%s1] sm:$0x3]
      %v297 = vperm.slane %v295, 0
      %v298 = vperm.slane %v295, 1
      %v301 = vmul.f32 %v231, %v297
      %v302 = vmul.f32 %v232, %v298
      %v303 = vmul.f32 %v233, %v297
      %v304 = vmul.f32 %v234, %v298
      %v305 = vmul.f32 %v235, %v297
      %v306 = vmul.f32 %v236, %v298
      %v307 = vmul.f32 %v237, %v297
      %v308 = vmul.f32 %v238, %v298
      %v309 = vmul.f32 %v239, %v297
      %v310 = vmul.f32 %v240, %v298
      %v311 = vmul.f32 %v241, %v297
      %v312 = vmul.f32 %v242, %v298
      %v313 = vmul.f32 %v243, %v297
      %v314 = vmul.f32 %v244, %v298
      %v315 = vmul.f32 %v245, %v297
      %v316 = vmul.f32 %v246, %v298
      %v317 = vmul.f32 %v247, %v297
      %v318 = vmul.f32 %v248, %v298
      %v319 = vmul.f32 %v249, %v297
      %v320 = vmul.f32 %v250, %v298
      %v321 = vmul.f32 %v251, %v297
      %v322 = vmul.f32 %v252, %v298
      %v323 = vmul.f32 %v253, %v297
      %v324 = vmul.f32 %v254, %v298
      %v325 = vmul.f32 %v255, %v297
      %v326 = vmul.f32 %v256, %v298
      %v327 = vmul.f32 %v257, %v297
      %v328 = vmul.f32 %v258, %v298
      %v329 = vmul.f32 %v259, %v297
      %v330 = vmul.f32 %v260, %v298
      %v331 = vmul.f32 %v261, %v297
      %v332 = vmul.f32 %v262, %v298
      %v333 = vmul.f32 %v263, %v297
      %v334 = vmul.f32 %v264, %v298
      %v335 = vmul.f32 %v265, %v297
      %v336 = vmul.f32 %v266, %v298
      %v337 = vmul.f32 %v267, %v297
      %v338 = vmul.f32 %v268, %v298
      %v339 = vmul.f32 %v269, %v297
      %v340 = vmul.f32 %v270, %v298
      %v341 = vmul.f32 %v271, %v297
      %v342 = vmul.f32 %v272, %v298
      %v343 = vmul.f32 %v273, %v297
      %v344 = vmul.f32 %v274, %v298
      %v345 = vmul.f32 %v275, %v297
      %v346 = vmul.f32 %v276, %v298
      %v347 = vmul.f32 %v277, %v297
      %v348 = vmul.f32 %v278, %v298
      %v349 = vmul.f32 %v279, %v297
      %v350 = vmul.f32 %v280, %v298
      %v351 = vmul.f32 %v281, %v297
      %v352 = vmul.f32 %v282, %v298
      %v353 = vmul.f32 %v283, %v297
      %v354 = vmul.f32 %v284, %v298
      %v355 = vmul.f32 %v285, %v297
      %v356 = vmul.f32 %v286, %v298
      %v357 = vmul.f32 %v287, %v297
      %v358 = vmul.f32 %v288, %v298
      %v359 = vmul.f32 %v289, %v297
      %v360 = vmul.f32 %v290, %v298
      %v361 = vmul.f32 %v291, %v297
      %v362 = vmul.f32 %v292, %v298
      %v363 = vmul.f32 %v293, %v297
      %v364 = vmul.f32 %v294, %v298
      %v365 = vld [vmem:[%s2] sm:$0x3]
      %v367 = vperm.slane %v365, 0
      %v368 = vperm.slane %v365, 1
      %v371 = vadd.f32 %v301, %v367
      %v372 = vadd.f32 %v302, %v368
      %v373 = vadd.f32 %v303, %v367
      %v374 = vadd.f32 %v304, %v368
      %v375 = vadd.f32 %v305, %v367
      %v376 = vadd.f32 %v306, %v368
      %v377 = vadd.f32 %v307, %v367
      %v378 = vadd.f32 %v308, %v368
      %v379 = vadd.f32 %v309, %v367
      %v380 = vadd.f32 %v310, %v368
      %v381 = vadd.f32 %v311, %v367
      %v382 = vadd.f32 %v312, %v368
      %v383 = vadd.f32 %v313, %v367
      %v384 = vadd.f32 %v314, %v368
      %v385 = vadd.f32 %v315, %v367
      %v386 = vadd.f32 %v316, %v368
      %v387 = vadd.f32 %v317, %v367
      %v388 = vadd.f32 %v318, %v368
      %v389 = vadd.f32 %v319, %v367
      %v390 = vadd.f32 %v320, %v368
      %v391 = vadd.f32 %v321, %v367
      %v392 = vadd.f32 %v322, %v368
      %v393 = vadd.f32 %v323, %v367
      %v394 = vadd.f32 %v324, %v368
      %v395 = vadd.f32 %v325, %v367
      %v396 = vadd.f32 %v326, %v368
      %v397 = vadd.f32 %v327, %v367
      %v398 = vadd.f32 %v328, %v368
      %v399 = vadd.f32 %v329, %v367
      %v400 = vadd.f32 %v330, %v368
      %v401 = vadd.f32 %v331, %v367
      %v402 = vadd.f32 %v332, %v368
      %v403 = vadd.f32 %v333, %v367
      %v404 = vadd.f32 %v334, %v368
      %v405 = vadd.f32 %v335, %v367
      %v406 = vadd.f32 %v336, %v368
      %v407 = vadd.f32 %v337, %v367
      %v408 = vadd.f32 %v338, %v368
      %v409 = vadd.f32 %v339, %v367
      %v410 = vadd.f32 %v340, %v368
      %v411 = vadd.f32 %v341, %v367
      %v412 = vadd.f32 %v342, %v368
      %v413 = vadd.f32 %v343, %v367
      %v414 = vadd.f32 %v344, %v368
      %v415 = vadd.f32 %v345, %v367
      %v416 = vadd.f32 %v346, %v368
      %v417 = vadd.f32 %v347, %v367
      %v418 = vadd.f32 %v348, %v368
      %v419 = vadd.f32 %v349, %v367
      %v420 = vadd.f32 %v350, %v368
      %v421 = vadd.f32 %v351, %v367
      %v422 = vadd.f32 %v352, %v368
      %v423 = vadd.f32 %v353, %v367
      %v424 = vadd.f32 %v354, %v368
      %v425 = vadd.f32 %v355, %v367
      %v426 = vadd.f32 %v356, %v368
      %v427 = vadd.f32 %v357, %v367
      %v428 = vadd.f32 %v358, %v368
      %v429 = vadd.f32 %v359, %v367
      %v430 = vadd.f32 %v360, %v368
      %v431 = vadd.f32 %v361, %v367
      %v432 = vadd.f32 %v362, %v368
      %v433 = vadd.f32 %v363, %v367
      %v434 = vadd.f32 %v364, %v368
      %vm435 = vcmp.gt.f32.partialorder %v371, 0.0
      %vm436 = vcmp.gt.f32.partialorder %v372, 0.0
      %vm437 = vcmp.gt.f32.partialorder %v373, 0.0
      %vm438 = vcmp.gt.f32.partialorder %v374, 0.0
      %vm439 = vcmp.gt.f32.partialorder %v375, 0.0
      %vm440 = vcmp.gt.f32.partialorder %v376, 0.0
      %vm441 = vcmp.gt.f32.partialorder %v377, 0.0
      %vm442 = vcmp.gt.f32.partialorder %v378, 0.0
      %vm443 = vcmp.gt.f32.partialorder %v379, 0.0
      %vm444 = vcmp.gt.f32.partialorder %v380, 0.0
      %vm445 = vcmp.gt.f32.partialorder %v381, 0.0
      %vm446 = vcmp.gt.f32.partialorder %v382, 0.0
      %vm447 = vcmp.gt.f32.partialorder %v383, 0.0
      %vm448 = vcmp.gt.f32.partialorder %v384, 0.0
      %vm449 = vcmp.gt.f32.partialorder %v385, 0.0
      %vm450 = vcmp.gt.f32.partialorder %v386, 0.0
      %vm451 = vcmp.gt.f32.partialorder %v387, 0.0
      %vm452 = vcmp.gt.f32.partialorder %v388, 0.0
      %vm453 = vcmp.gt.f32.partialorder %v389, 0.0
      %vm454 = vcmp.gt.f32.partialorder %v390, 0.0
      %vm455 = vcmp.gt.f32.partialorder %v391, 0.0
      %vm456 = vcmp.gt.f32.partialorder %v392, 0.0
      %vm457 = vcmp.gt.f32.partialorder %v393, 0.0
      %vm458 = vcmp.gt.f32.partialorder %v394, 0.0
      %vm459 = vcmp.gt.f32.partialorder %v395, 0.0
      %vm460 = vcmp.gt.f32.partialorder %v396, 0.0
      %vm461 = vcmp.gt.f32.partialorder %v397, 0.0
      %vm462 = vcmp.gt.f32.partialorder %v398, 0.0
      %vm463 = vcmp.gt.f32.partialorder %v399, 0.0
      %vm464 = vcmp.gt.f32.partialorder %v400, 0.0
      %vm465 = vcmp.gt.f32.partialorder %v401, 0.0
      %vm466 = vcmp.gt.f32.partialorder %v402, 0.0
      %vm467 = vcmp.gt.f32.partialorder %v403, 0.0
      %vm468 = vcmp.gt.f32.partialorder %v404, 0.0
      %vm469 = vcmp.gt.f32.partialorder %v405, 0.0
      %vm470 = vcmp.gt.f32.partialorder %v406, 0.0
      %vm471 = vcmp.gt.f32.partialorder %v407, 0.0
      %vm472 = vcmp.gt.f32.partialorder %v408, 0.0
      %vm473 = vcmp.gt.f32.partialorder %v409, 0.0
      %vm474 = vcmp.gt.f32.partialorder %v410, 0.0
      %vm475 = vcmp.gt.f32.partialorder %v411, 0.0
      %vm476 = vcmp.gt.f32.partialorder %v412, 0.0
      %vm477 = vcmp.gt.f32.partialorder %v413, 0.0
      %vm478 = vcmp.gt.f32.partialorder %v414, 0.0
      %vm479 = vcmp.gt.f32.partialorder %v415, 0.0
      %vm480 = vcmp.gt.f32.partialorder %v416, 0.0
      %vm481 = vcmp.gt.f32.partialorder %v417, 0.0
      %vm482 = vcmp.gt.f32.partialorder %v418, 0.0
      %vm483 = vcmp.gt.f32.partialorder %v419, 0.0
      %vm484 = vcmp.gt.f32.partialorder %v420, 0.0
      %vm485 = vcmp.gt.f32.partialorder %v421, 0.0
      %vm486 = vcmp.gt.f32.partialorder %v422, 0.0
      %vm487 = vcmp.gt.f32.partialorder %v423, 0.0
      %vm488 = vcmp.gt.f32.partialorder %v424, 0.0
      %vm489 = vcmp.gt.f32.partialorder %v425, 0.0
      %vm490 = vcmp.gt.f32.partialorder %v426, 0.0
      %vm491 = vcmp.gt.f32.partialorder %v427, 0.0
      %vm492 = vcmp.gt.f32.partialorder %v428, 0.0
      %vm493 = vcmp.gt.f32.partialorder %v429, 0.0
      %vm494 = vcmp.gt.f32.partialorder %v430, 0.0
      %vm495 = vcmp.gt.f32.partialorder %v431, 0.0
      %vm496 = vcmp.gt.f32.partialorder %v432, 0.0
      %vm497 = vcmp.gt.f32.partialorder %v433, 0.0
      %vm498 = vcmp.gt.f32.partialorder %v434, 0.0
      %v499 = vmul.f32 %v371, 0.1
      %v500 = vmul.f32 %v372, 0.1
      %v501 = vmul.f32 %v373, 0.1
      %v502 = vmul.f32 %v374, 0.1
      %v503 = vmul.f32 %v375, 0.1
      %v504 = vmul.f32 %v376, 0.1
      %v505 = vmul.f32 %v377, 0.1
      %v506 = vmul.f32 %v378, 0.1
      %v507 = vmul.f32 %v379, 0.1
      %v508 = vmul.f32 %v380, 0.1
      %v509 = vmul.f32 %v381, 0.1
      %v510 = vmul.f32 %v382, 0.1
      %v511 = vmul.f32 %v383, 0.1
      %v512 = vmul.f32 %v384, 0.1
      %v513 = vmul.f32 %v385, 0.1
      %v514 = vmul.f32 %v386, 0.1
      %v515 = vmul.f32 %v387, 0.1
      %v516 = vmul.f32 %v388, 0.1
      %v517 = vmul.f32 %v389, 0.1
      %v518 = vmul.f32 %v390, 0.1
      %v519 = vmul.f32 %v391, 0.1
      %v520 = vmul.f32 %v392, 0.1
      %v521 = vmul.f32 %v393, 0.1
      %v522 = vmul.f32 %v394, 0.1
      %v523 = vmul.f32 %v395, 0.1
      %v524 = vmul.f32 %v396, 0.1
      %v525 = vmul.f32 %v397, 0.1
      %v526 = vmul.f32 %v398, 0.1
      %v527 = vmul.f32 %v399, 0.1
      %v528 = vmul.f32 %v400, 0.1
      %v529 = vmul.f32 %v401, 0.1
      %v530 = vmul.f32 %v402, 0.1
      %v531 = vmul.f32 %v403, 0.1
      %v532 = vmul.f32 %v404, 0.1
      %v533 = vmul.f32 %v405, 0.1
      %v534 = vmul.f32 %v406, 0.1
      %v535 = vmul.f32 %v407, 0.1
      %v536 = vmul.f32 %v408, 0.1
      %v537 = vmul.f32 %v409, 0.1
      %v538 = vmul.f32 %v410, 0.1
      %v539 = vmul.f32 %v411, 0.1
      %v540 = vmul.f32 %v412, 0.1
      %v541 = vmul.f32 %v413, 0.1
      %v542 = vmul.f32 %v414, 0.1
      %v543 = vmul.f32 %v415, 0.1
      %v544 = vmul.f32 %v416, 0.1
      %v545 = vmul.f32 %v417, 0.1
      %v546 = vmul.f32 %v418, 0.1
      %v547 = vmul.f32 %v419, 0.1
      %v548 = vmul.f32 %v420, 0.1
      %v549 = vmul.f32 %v421, 0.1
      %v550 = vmul.f32 %v422, 0.1
      %v551 = vmul.f32 %v423, 0.1
      %v552 = vmul.f32 %v424, 0.1
      %v553 = vmul.f32 %v425, 0.1
      %v554 = vmul.f32 %v426, 0.1
      %v555 = vmul.f32 %v427, 0.1
      %v556 = vmul.f32 %v428, 0.1
      %v557 = vmul.f32 %v429, 0.1
      %v558 = vmul.f32 %v430, 0.1
      %v559 = vmul.f32 %v431, 0.1
      %v560 = vmul.f32 %v432, 0.1
      %v561 = vmul.f32 %v433, 0.1
      %v562 = vmul.f32 %v434, 0.1
      %v563 = vsel %vm435, %v371, %v499
      %v564 = vsel %vm436, %v372, %v500
      %v565 = vsel %vm437, %v373, %v501
      %v566 = vsel %vm438, %v374, %v502
      %v567 = vsel %vm439, %v375, %v503
      %v568 = vsel %vm440, %v376, %v504
      %v569 = vsel %vm441, %v377, %v505
      %v570 = vsel %vm442, %v378, %v506
      %v571 = vsel %vm443, %v379, %v507
      %v572 = vsel %vm444, %v380, %v508
      %v573 = vsel %vm445, %v381, %v509
      %v574 = vsel %vm446, %v382, %v510
      %v575 = vsel %vm447, %v383, %v511
      %v576 = vsel %vm448, %v384, %v512
      %v577 = vsel %vm449, %v385, %v513
      %v578 = vsel %vm450, %v386, %v514
      %v579 = vsel %vm451, %v387, %v515
      %v580 = vsel %vm452, %v388, %v516
      %v581 = vsel %vm453, %v389, %v517
      %v582 = vsel %vm454, %v390, %v518
      %v583 = vsel %vm455, %v391, %v519
      %v584 = vsel %vm456, %v392, %v520
      %v585 = vsel %vm457, %v393, %v521
      %v586 = vsel %vm458, %v394, %v522
      %v587 = vsel %vm459, %v395, %v523
      %v588 = vsel %vm460, %v396, %v524
      %v589 = vsel %vm461, %v397, %v525
      %v590 = vsel %vm462, %v398, %v526
      %v591 = vsel %vm463, %v399, %v527
      %v592 = vsel %vm464, %v400, %v528
      %v593 = vsel %vm465, %v401, %v529
      %v594 = vsel %vm466, %v402, %v530
      %v595 = vsel %vm467, %v403, %v531
      %v596 = vsel %vm468, %v404, %v532
      %v597 = vsel %vm469, %v405, %v533
      %v598 = vsel %vm470, %v406, %v534
      %v599 = vsel %vm471, %v407, %v535
      %v600 = vsel %vm472, %v408, %v536
      %v601 = vsel %vm473, %v409, %v537
      %v602 = vsel %vm474, %v410, %v538
      %v603 = vsel %vm475, %v411, %v539
      %v604 = vsel %vm476, %v412, %v540
      %v605 = vsel %vm477, %v413, %v541
      %v606 = vsel %vm478, %v414, %v542
      %v607 = vsel %vm479, %v415, %v543
      %v608 = vsel %vm480, %v416, %v544
      %v609 = vsel %vm481, %v417, %v545
      %v610 = vsel %vm482, %v418, %v546
      %v611 = vsel %vm483, %v419, %v547
      %v612 = vsel %vm484, %v420, %v548
      %v613 = vsel %vm485, %v421, %v549
      %v614 = vsel %vm486, %v422, %v550
      %v615 = vsel %vm487, %v423, %v551
      %v616 = vsel %vm488, %v424, %v552
      %v617 = vsel %vm489, %v425, %v553
      %v618 = vsel %vm490, %v426, %v554
      %v619 = vsel %vm491, %v427, %v555
      %v620 = vsel %vm492, %v428, %v556
      %v621 = vsel %vm493, %v429, %v557
      %v622 = vsel %vm494, %v430, %v558
      %v623 = vsel %vm495, %v431, %v559
      %v624 = vsel %vm496, %v432, %v560
      %v625 = vsel %vm497, %v433, %v561
      %v626 = vsel %vm498, %v434, %v562
      %v627 = vpack.c.bf16 %v565, %v563
      %v628 = vpack.c.bf16 %v566, %v564
      %v629 = vpack.c.bf16 %v569, %v567
      %v630 = vpack.c.bf16 %v570, %v568
      %v631 = vpack.c.bf16 %v573, %v571
      %v632 = vpack.c.bf16 %v574, %v572
      %v633 = vpack.c.bf16 %v577, %v575
      %v634 = vpack.c.bf16 %v578, %v576
      %v635 = vpack.c.bf16 %v581, %v579
      %v636 = vpack.c.bf16 %v582, %v580
      %v637 = vpack.c.bf16 %v585, %v583
      %v638 = vpack.c.bf16 %v586, %v584
      %v639 = vpack.c.bf16 %v589, %v587
      %v640 = vpack.c.bf16 %v590, %v588
      %v641 = vpack.c.bf16 %v593, %v591
      %v642 = vpack.c.bf16 %v594, %v592
      %v643 = vpack.c.bf16 %v597, %v595
      %v644 = vpack.c.bf16 %v598, %v596
      %v645 = vpack.c.bf16 %v601, %v599
      %v646 = vpack.c.bf16 %v602, %v600
      %v647 = vpack.c.bf16 %v605, %v603
      %v648 = vpack.c.bf16 %v606, %v604
      %v649 = vpack.c.bf16 %v609, %v607
      %v650 = vpack.c.bf16 %v610, %v608
      %v651 = vpack.c.bf16 %v613, %v611
      %v652 = vpack.c.bf16 %v614, %v612
      %v653 = vpack.c.bf16 %v617, %v615
      %v654 = vpack.c.bf16 %v618, %v616
      %v655 = vpack.c.bf16 %v621, %v619
      %v656 = vpack.c.bf16 %v622, %v620
      %v657 = vpack.c.bf16 %v625, %v623
      %v658 = vpack.c.bf16 %v626, %v624
      %v659 = vld [vmem:[%s3] sm:$0xf]
      %v660 = vld [vmem:[%s3 + $0x4] sm:$0xf]
      %v661 = vld [vmem:[%s3 + $0x8] sm:$0xf]
      %v662 = vld [vmem:[%s3 + $0xc] sm:$0xf]
      %v663 = vld [vmem:[%s3 + $0x10] sm:$0xf]
      %v664 = vld [vmem:[%s3 + $0x14] sm:$0xf]
      %v665 = vld [vmem:[%s3 + $0x18] sm:$0xf]
      %v666 = vld [vmem:[%s3 + $0x1c] sm:$0xf]
      %v667 = vld [vmem:[%s3 + $0x20] sm:$0xf]
      %v668 = vld [vmem:[%s3 + $0x24] sm:$0xf]
      %v669 = vld [vmem:[%s3 + $0x28] sm:$0xf]
      %v670 = vld [vmem:[%s3 + $0x2c] sm:$0xf]
      %v671 = vld [vmem:[%s3 + $0x30] sm:$0xf]
      %v672 = vld [vmem:[%s3 + $0x34] sm:$0xf]
      %v673 = vld [vmem:[%s3 + $0x38] sm:$0xf]
      %v674 = vld [vmem:[%s3 + $0x3c] sm:$0xf]
      %v675 = vld [vmem:[%s3 + $0x40] sm:$0xf]
      %v676 = vld [vmem:[%s3 + $0x44] sm:$0xf]
      %v677 = vld [vmem:[%s3 + $0x48] sm:$0xf]
      %v678 = vld [vmem:[%s3 + $0x4c] sm:$0xf]
      %v679 = vld [vmem:[%s3 + $0x50] sm:$0xf]
      %v680 = vld [vmem:[%s3 + $0x54] sm:$0xf]
      %v681 = vld [vmem:[%s3 + $0x58] sm:$0xf]
      %v682 = vld [vmem:[%s3 + $0x5c] sm:$0xf]
      %v683 = vld [vmem:[%s3 + $0x60] sm:$0xf]
      %v684 = vld [vmem:[%s3 + $0x64] sm:$0xf]
      %v685 = vld [vmem:[%s3 + $0x68] sm:$0xf]
      %v686 = vld [vmem:[%s3 + $0x6c] sm:$0xf]
      %v687 = vld [vmem:[%s3 + $0x70] sm:$0xf]
      %v688 = vld [vmem:[%s3 + $0x74] sm:$0xf]
      %v689 = vld [vmem:[%s3 + $0x78] sm:$0xf]
      %v690 = vld [vmem:[%s3 + $0x7c] sm:$0xf]
      %v691 = vld [vmem:[%s4] sm:$0x1]
      %v693 = vperm.slane %v691, 0
      %v727 = vunpack.c.l.b16 %v659
      %v728 = vunpack.c.l.b16 %v660
      %v729 = vunpack.c.l.b16 %v661
      %v730 = vunpack.c.l.b16 %v662
      %v731 = vunpack.c.l.b16 %v663
      %v732 = vunpack.c.l.b16 %v664
      %v733 = vunpack.c.l.b16 %v665
      %v734 = vunpack.c.l.b16 %v666
      %v735 = vunpack.c.l.b16 %v667
      %v736 = vunpack.c.l.b16 %v668
      %v737 = vunpack.c.l.b16 %v669
      %v738 = vunpack.c.l.b16 %v670
      %v739 = vunpack.c.l.b16 %v671
      %v740 = vunpack.c.l.b16 %v672
      %v741 = vunpack.c.l.b16 %v673
      %v742 = vunpack.c.l.b16 %v674
      %v743 = vunpack.c.l.b16 %v675
      %v744 = vunpack.c.l.b16 %v676
      %v745 = vunpack.c.l.b16 %v677
      %v746 = vunpack.c.l.b16 %v678
      %v747 = vunpack.c.l.b16 %v679
      %v748 = vunpack.c.l.b16 %v680
      %v749 = vunpack.c.l.b16 %v681
      %v750 = vunpack.c.l.b16 %v682
      %v751 = vunpack.c.l.b16 %v683
      %v752 = vunpack.c.l.b16 %v684
      %v753 = vunpack.c.l.b16 %v685
      %v754 = vunpack.c.l.b16 %v686
      %v755 = vunpack.c.l.b16 %v687
      %v756 = vunpack.c.l.b16 %v688
      %v757 = vunpack.c.l.b16 %v689
      %v758 = vunpack.c.l.b16 %v690
      %v759 = vpack.c.b16 %v728, %v727
      %v760 = vpack.c.b16 %v730, %v729
      %v761 = vpack.c.b16 %v732, %v731
      %v762 = vpack.c.b16 %v734, %v733
      %v763 = vpack.c.b16 %v736, %v735
      %v764 = vpack.c.b16 %v738, %v737
      %v765 = vpack.c.b16 %v740, %v739
      %v766 = vpack.c.b16 %v742, %v741
      %v767 = vpack.c.b16 %v744, %v743
      %v768 = vpack.c.b16 %v746, %v745
      %v769 = vpack.c.b16 %v748, %v747
      %v770 = vpack.c.b16 %v750, %v749
      %v771 = vpack.c.b16 %v752, %v751
      %v772 = vpack.c.b16 %v754, %v753
      %v773 = vpack.c.b16 %v756, %v755
      %v774 = vpack.c.b16 %v758, %v757
      %791 = vmatpush.bf16.msra.mxu0 %v766
      %792 = vmatpush.bf16.msra.mxu0 %v765
      %793 = vmatpush.bf16.msra.mxu0 %v764
      %794 = vmatpush.bf16.msra.mxu0 %v763
      %795 = vmatpush.bf16.msra.mxu0 %v762
      %796 = vmatpush.bf16.msra.mxu0 %v761
      %797 = vmatpush.bf16.msra.mxu0 %v760
      %798 = vmatpush.bf16.msra.mxu0 %v759
      %799 = vmatmul.bf16.gmra.mxu0 %v627
      %v800 = vpop.f32.mrf.mxu0
      %v801 = vadd.f32 %v693, %v800
      %v802 = vpop.f32.mrf.mxu0
      %v803 = vadd.f32 %v693, %v802
      %804 = vmatmul.bf16.gmra.mxu0 %v629
      %v805 = vpop.f32.mrf.mxu0
      %v806 = vadd.f32 %v693, %v805
      %v807 = vpop.f32.mrf.mxu0
      %v808 = vadd.f32 %v693, %v807
      %809 = vmatmul.bf16.gmra.mxu0 %v631
      %v810 = vpop.f32.mrf.mxu0
      %v811 = vadd.f32 %v693, %v810
      %v812 = vpop.f32.mrf.mxu0
      %v813 = vadd.f32 %v693, %v812
      %814 = vmatmul.bf16.gmra.mxu0 %v633
      %v815 = vpop.f32.mrf.mxu0
      %v816 = vadd.f32 %v693, %v815
      %v817 = vpop.f32.mrf.mxu0
      %v818 = vadd.f32 %v693, %v817
      %819 = vmatmul.bf16.gmra.mxu0 %v635
      %v820 = vpop.f32.mrf.mxu0
      %v821 = vadd.f32 %v693, %v820
      %v822 = vpop.f32.mrf.mxu0
      %v823 = vadd.f32 %v693, %v822
      %824 = vmatmul.bf16.gmra.mxu0 %v637
      %v825 = vpop.f32.mrf.mxu0
      %v826 = vadd.f32 %v693, %v825
      %v827 = vpop.f32.mrf.mxu0
      %v828 = vadd.f32 %v693, %v827
      %829 = vmatmul.bf16.gmra.mxu0 %v639
      %v830 = vpop.f32.mrf.mxu0
      %v831 = vadd.f32 %v693, %v830
      %v832 = vpop.f32.mrf.mxu0
      %v833 = vadd.f32 %v693, %v832
      %834 = vmatmul.bf16.gmra.mxu0 %v641
      %v835 = vpop.f32.mrf.mxu0
      %v836 = vadd.f32 %v693, %v835
      %v837 = vpop.f32.mrf.mxu0
      %v838 = vadd.f32 %v693, %v837
      %839 = vmatmul.bf16.gmra.mxu0 %v643
      %v840 = vpop.f32.mrf.mxu0
      %v841 = vadd.f32 %v693, %v840
      %v842 = vpop.f32.mrf.mxu0
      %v843 = vadd.f32 %v693, %v842
      %844 = vmatmul.bf16.gmra.mxu0 %v645
      %v845 = vpop.f32.mrf.mxu0
      %v846 = vadd.f32 %v693, %v845
      %v847 = vpop.f32.mrf.mxu0
      %v848 = vadd.f32 %v693, %v847
      %849 = vmatmul.bf16.gmra.mxu0 %v647
      %v850 = vpop.f32.mrf.mxu0
      %v851 = vadd.f32 %v693, %v850
      %v852 = vpop.f32.mrf.mxu0
      %v853 = vadd.f32 %v693, %v852
      %854 = vmatmul.bf16.gmra.mxu0 %v649
      %v855 = vpop.f32.mrf.mxu0
      %v856 = vadd.f32 %v693, %v855
      %v857 = vpop.f32.mrf.mxu0
      %v858 = vadd.f32 %v693, %v857
      %859 = vmatmul.bf16.gmra.mxu0 %v651
      %v860 = vpop.f32.mrf.mxu0
      %v861 = vadd.f32 %v693, %v860
      %v862 = vpop.f32.mrf.mxu0
      %v863 = vadd.f32 %v693, %v862
      %864 = vmatmul.bf16.gmra.mxu0 %v653
      %v865 = vpop.f32.mrf.mxu0
      %v866 = vadd.f32 %v693, %v865
      %v867 = vpop.f32.mrf.mxu0
      %v868 = vadd.f32 %v693, %v867
      %869 = vmatmul.bf16.gmra.mxu0 %v655
      %v870 = vpop.f32.mrf.mxu0
      %v871 = vadd.f32 %v693, %v870
      %v872 = vpop.f32.mrf.mxu0
      %v873 = vadd.f32 %v693, %v872
      %874 = vmatmul.bf16.gmra.mxu0 %v657
      %v875 = vpop.f32.mrf.mxu0
      %v876 = vadd.f32 %v693, %v875
      %v877 = vpop.f32.mrf.mxu0
      %v878 = vadd.f32 %v693, %v877
      %879 = vdwg.mxu0
      %880 = vmatpush.bf16.msra.mxu0 %v774
      %881 = vmatpush.bf16.msra.mxu0 %v773
      %882 = vmatpush.bf16.msra.mxu0 %v772
      %883 = vmatpush.bf16.msra.mxu0 %v771
      %884 = vmatpush.bf16.msra.mxu0 %v770
      %885 = vmatpush.bf16.msra.mxu0 %v769
      %886 = vmatpush.bf16.msra.mxu0 %v768
      %887 = vmatpush.bf16.msra.mxu0 %v767
      %888 = vmatmul.bf16.gmra.mxu0 %v628
      %v889 = vpop.f32.mrf.mxu0
      %v890 = vadd.f32 %v801, %v889
      %v891 = vpop.f32.mrf.mxu0
      %v892 = vadd.f32 %v803, %v891
      %893 = vmatmul.bf16.gmra.mxu0 %v630
      %v894 = vpop.f32.mrf.mxu0
      %v895 = vadd.f32 %v806, %v894
      %v896 = vpop.f32.mrf.mxu0
      %v897 = vadd.f32 %v808, %v896
      %898 = vmatmul.bf16.gmra.mxu0 %v632
      %v899 = vpop.f32.mrf.mxu0
      %v900 = vadd.f32 %v811, %v899
      %v901 = vpop.f32.mrf.mxu0
      %v902 = vadd.f32 %v813, %v901
      %903 = vmatmul.bf16.gmra.mxu0 %v634
      %v904 = vpop.f32.mrf.mxu0
      %v905 = vadd.f32 %v816, %v904
      %v906 = vpop.f32.mrf.mxu0
      %v907 = vadd.f32 %v818, %v906
      %908 = vmatmul.bf16.gmra.mxu0 %v636
      %v909 = vpop.f32.mrf.mxu0
      %v910 = vadd.f32 %v821, %v909
      %v911 = vpop.f32.mrf.mxu0
      %v912 = vadd.f32 %v823, %v911
      %913 = vmatmul.bf16.gmra.mxu0 %v638
      %v914 = vpop.f32.mrf.mxu0
      %v915 = vadd.f32 %v826, %v914
      %v916 = vpop.f32.mrf.mxu0
      %v917 = vadd.f32 %v828, %v916
      %918 = vmatmul.bf16.gmra.mxu0 %v640
      %v919 = vpop.f32.mrf.mxu0
      %v920 = vadd.f32 %v831, %v919
      %v921 = vpop.f32.mrf.mxu0
      %v922 = vadd.f32 %v833, %v921
      %923 = vmatmul.bf16.gmra.mxu0 %v642
      %v924 = vpop.f32.mrf.mxu0
      %v925 = vadd.f32 %v836, %v924
      %v926 = vpop.f32.mrf.mxu0
      %v927 = vadd.f32 %v838, %v926
      %928 = vmatmul.bf16.gmra.mxu0 %v644
      %v929 = vpop.f32.mrf.mxu0
      %v930 = vadd.f32 %v841, %v929
      %v931 = vpop.f32.mrf.mxu0
      %v932 = vadd.f32 %v843, %v931
      %933 = vmatmul.bf16.gmra.mxu0 %v646
      %v934 = vpop.f32.mrf.mxu0
      %v935 = vadd.f32 %v846, %v934
      %v936 = vpop.f32.mrf.mxu0
      %v937 = vadd.f32 %v848, %v936
      %938 = vmatmul.bf16.gmra.mxu0 %v648
      %v939 = vpop.f32.mrf.mxu0
      %v940 = vadd.f32 %v851, %v939
      %v941 = vpop.f32.mrf.mxu0
      %v942 = vadd.f32 %v853, %v941
      %943 = vmatmul.bf16.gmra.mxu0 %v650
      %v944 = vpop.f32.mrf.mxu0
      %v945 = vadd.f32 %v856, %v944
      %v946 = vpop.f32.mrf.mxu0
      %v947 = vadd.f32 %v858, %v946
      %948 = vmatmul.bf16.gmra.mxu0 %v652
      %v949 = vpop.f32.mrf.mxu0
      %v950 = vadd.f32 %v861, %v949
      %v951 = vpop.f32.mrf.mxu0
      %v952 = vadd.f32 %v863, %v951
      %953 = vmatmul.bf16.gmra.mxu0 %v654
      %v954 = vpop.f32.mrf.mxu0
      %v955 = vadd.f32 %v866, %v954
      %v956 = vpop.f32.mrf.mxu0
      %v957 = vadd.f32 %v868, %v956
      %958 = vmatmul.bf16.gmra.mxu0 %v656
      %v959 = vpop.f32.mrf.mxu0
      %v960 = vadd.f32 %v871, %v959
      %v961 = vpop.f32.mrf.mxu0
      %v962 = vadd.f32 %v873, %v961
      %963 = vmatmul.bf16.gmra.mxu0 %v658
      %v964 = vpop.f32.mrf.mxu0
      %v965 = vadd.f32 %v876, %v964
      %v966 = vpop.f32.mrf.mxu0
      %v967 = vadd.f32 %v878, %v966
      %968 = vdwg.mxu0
      %969 = vst [vmem:[%s229] sm:$0xff] %v890
      %970 = vst [vmem:[%s229 + $0x8] sm:$0xff] %v892
      %971 = vst [vmem:[%s229 + $0x10] sm:$0xff] %v895
      %972 = vst [vmem:[%s229 + $0x18] sm:$0xff] %v897
      %973 = vst [vmem:[%s229 + $0x20] sm:$0xff] %v900
      %974 = vst [vmem:[%s229 + $0x28] sm:$0xff] %v902
      %975 = vst [vmem:[%s229 + $0x30] sm:$0xff] %v905
      %976 = vst [vmem:[%s229 + $0x38] sm:$0xff] %v907
      %977 = vst [vmem:[%s229 + $0x40] sm:$0xff] %v910
      %978 = vst [vmem:[%s229 + $0x48] sm:$0xff] %v912
      %979 = vst [vmem:[%s229 + $0x50] sm:$0xff] %v915
      %980 = vst [vmem:[%s229 + $0x58] sm:$0xff] %v917
      %981 = vst [vmem:[%s229 + $0x60] sm:$0xff] %v920
      %982 = vst [vmem:[%s229 + $0x68] sm:$0xff] %v922
      %983 = vst [vmem:[%s229 + $0x70] sm:$0xff] %v925
      %984 = vst [vmem:[%s229 + $0x78] sm:$0xff] %v927
      %985 = vst [vmem:[%s229 + $0x80] sm:$0xff] %v930
      %986 = vst [vmem:[%s229 + $0x88] sm:$0xff] %v932
      %987 = vst [vmem:[%s229 + $0x90] sm:$0xff] %v935
      %988 = vst [vmem:[%s229 + $0x98] sm:$0xff] %v937
      %989 = vst [vmem:[%s229 + $0xa0] sm:$0xff] %v940
      %990 = vst [vmem:[%s229 + $0xa8] sm:$0xff] %v942
      %991 = vst [vmem:[%s229 + $0xb0] sm:$0xff] %v945
      %992 = vst [vmem:[%s229 + $0xb8] sm:$0xff] %v947
      %993 = vst [vmem:[%s229 + $0xc0] sm:$0xff] %v950
      %994 = vst [vmem:[%s229 + $0xc8] sm:$0xff] %v952
      %995 = vst [vmem:[%s229 + $0xd0] sm:$0xff] %v955
      %996 = vst [vmem:[%s229 + $0xd8] sm:$0xff] %v957
      %997 = vst [vmem:[%s229 + $0xe0] sm:$0xff] %v960
      %998 = vst [vmem:[%s229 + $0xe8] sm:$0xff] %v962
      %999 = vst [vmem:[%s229 + $0xf0] sm:$0xff] %v965
      %1000 = vst [vmem:[%s229 + $0xf8] sm:$0xff] %v967
      %s1001 = smul.u32 32, %s16
      %p1002 = scmp.lt.s32.totalorder %s1001, 63
      %s1003 = scalar_select %p1002, %s1001, 63
      %s1004 = smul.addr %s1003, 8
      %s1005 = scalar_lea.vmem %s5, %s1004
      // Predicated region
      $region41: #{scale_prediction_forward.3} parent=39 // pred_check
        %p1006 = pneg %p144
      $region42: #{scale_prediction_forward.3} parent=39 // pred_check_branch
        %1008 = sbr.rel (%p1006) target = $region44
      $region43: #{scale_prediction_forward.3} parent=39 // pred_region
        %s1009 = smul.u32 32, %s16
      $region44: #{scale_prediction_forward.3} parent=39 // pred_fallthru
        _
    $region40: #{scale_prediction_forward.3} parent=5 // pred_fallthru
      _
    %p1010 = scmp.le.s32.totalorder 2, %s11
    // Predicated region
    $region45: #{scale_prediction_forward.3} parent=5 // pred_check
      %p1011 = pneg %p1010
    $region46: #{scale_prediction_forward.3} parent=5 // pred_check_branch
      %1013 = sbr.rel (%p1011) target = $region48
    $region47: #{scale_prediction_forward.3} parent=5 // pred_region
      %s1014 = ssub.s32 %s11, 2
      // Predicated region
      $region49: #{scale_prediction_forward.3} parent=47 // pred_check
        %p1015 = pneg %p150
      $region50: #{scale_prediction_forward.3} parent=47 // pred_check_branch
        %1017 = sbr.rel (%p1015) target = $region52
      $region51: #{scale_prediction_forward.3} parent=47 // pred_region
        %s1018 = smul.u32 32, %s17
        %p1019 = scmp.lt.s32.totalorder %s1018, 63
        %s1020 = scalar_select %p1019, %s1018, 63
        %s1021 = smul.addr %s1020, 8
        %s1022 = scalar_lea.vmem %s5, %s1021
      $region52: #{scale_prediction_forward.3} parent=47 // pred_fallthru
        _
    $region48: #{scale_prediction_forward.3} parent=5 // pred_fallthru
      _
  $region6: #{scale_prediction_forward.3} parent=0 // loop_footer
    %s15 = sadd.s32 1, %s11
  $region7: #{scale_prediction_forward.3} parent=0 // loop_footer_branch
    %10 = sbr.rel target = $region3
  $region8: #{scale_prediction_forward.3} parent=0 // loop_exit
    _

</llo_original>
